<compile_context>
chip_gen: v5e
topology: v5e:2x2
jax: 0.10.0
libtpu: 0.0.40
codegen_flags: <defaults>
</compile_context>

<pallas_src>
import jax
import jax.numpy as jnp
from jax.experimental import pallas as pl
from jax.experimental.pallas import tpu as pltpu

TILE_B_MAX = 64  # images per grid step; blocks stay well under v5e's 16 MiB scoped VMEM


# ----------------------------- Pallas kernels ------------------------------ #

def _conv_pool_kernel(x_ref, w_ref, b_ref, o_ref):
    """Fused 3x3 valid conv + bias + ReLU + 2x2/2 maxpool for one batch tile.

    x_ref: (1, 4, KD, N) bf16  im2col patches; axis 1 = pool-window member,
                               KD = kh*kw*Cin taps (sublanes), N = TB*Hp*Wp (lanes)
    w_ref: (Cout, KD)  bf16    flattened conv weights (kh, kw, cin) order
    b_ref: (Cout, 1)   f32
    o_ref: (1, Cout, N) f32    pooled output, lane-dense
    """
    w = w_ref[...]
    b = b_ref[...]
    acc = None
    for d in range(4):  # static unroll over the 4 pool-window members
        y = jnp.dot(w, x_ref[0, d], preferred_element_type=jnp.float32)  # (Cout, N)
        y = jnp.maximum(y + b, 0.0)                    # conv + bias + ReLU
        acc = y if acc is None else jnp.maximum(acc, y)  # running 2x2 maxpool
    o_ref[0] = acc


def _mlp_head_kernel(x_ref, w1_ref, b1_ref, w2_ref, b2_ref, o_ref):
    """relu(x@W1+b1) -> relu(.@W2+b2) -> log_softmax(dim=1). Dropout = identity."""
    x = x_ref[0]                                                     # (TB, 800) bf16
    h = jnp.dot(x, w1_ref[...], preferred_element_type=jnp.float32)
    h = jnp.maximum(h + b1_ref[...], 0.0)
    z = jnp.dot(h.astype(w2_ref.dtype), w2_ref[...], preferred_element_type=jnp.float32)
    z = jnp.maximum(z + b2_ref[...], 0.0)
    m = jnp.max(z, axis=-1, keepdims=True)
    lse = m + jnp.log(jnp.sum(jnp.exp(z - m), axis=-1, keepdims=True))
    o_ref[0] = z - lse


# ------------------------------- JAX glue ---------------------------------- #

def _pool_patches(x_tcbhw, K):
    """(T, Cin, TB, H, W) -> (T, 4, K*K*Cin, TB*Hp*Wp) pool-member im2col patches.

    Feature axis order is (kh, kw, cin); lane axis order is (b, i, j).
    Built with slices + stacks only (no XLA transposes).
    """
    T, Cin, TB, H, W = x_tcbhw.shape
    Hp, Wp = (H - K + 1) // 2, (W - K + 1) // 2
    members = []
    for di in range(2):
        for dj in range(2):
            taps = []
            for kh in range(K):
                for kw in range(K):
                    taps.append(x_tcbhw[:, :, :,
                                        di + kh: di + kh + 2 * Hp: 2,
                                        dj + kw: dj + kw + 2 * Wp: 2])
            members.append(jnp.stack(taps, axis=1))      # (T, K*K, Cin, TB, Hp, Wp)
    p = jnp.stack(members, axis=1)                       # (T, 4, K*K, Cin, TB, Hp, Wp)
    return p.reshape(T, 4, K * K * Cin, TB * Hp * Wp), Hp, Wp


def _conv_relu_pool(patches, w_ck, b_c):
    """Conv2d(valid 3x3) -> ReLU -> MaxPool2d(2,2), batch-folded Pallas matmul."""
    T, _, KD, N = patches.shape
    Cout = w_ck.shape[0]
    return pl.pallas_call(
        _conv_pool_kernel,
        out_shape=jax.ShapeDtypeStruct((T, Cout, N), jnp.float32),
        grid=(T,),
        in_specs=[
            pl.BlockSpec((1, 4, KD, N), lambda i: (i, 0, 0, 0)),
            pl.BlockSpec((Cout, KD), lambda i: (0, 0)),
            pl.BlockSpec((Cout, 1), lambda i: (0, 0)),
        ],
        out_specs=pl.BlockSpec((1, Cout, N), lambda i: (i, 0, 0)),
        compiler_params=pltpu.CompilerParams(dimension_semantics=("parallel",)),
    )(patches, w_ck, b_c)


def _mlp_head(x, w1, b1, w2, b2):
    """fc1 -> ReLU -> fc2 -> ReLU -> log_softmax, fused, tiled over batch."""
    T, TB, F = x.shape
    H1, C = w1.shape[1], w2.shape[1]
    return pl.pallas_call(
        _mlp_head_kernel,
        out_shape=jax.ShapeDtypeStruct((T, TB, C), jnp.float32),
        grid=(T,),
        in_specs=[
            pl.BlockSpec((1, TB, F), lambda i: (i, 0, 0)),
            pl.BlockSpec((F, H1), lambda i: (0, 0)),   # weights resident across steps
            pl.BlockSpec((1, H1), lambda i: (0, 0)),
            pl.BlockSpec((H1, C), lambda i: (0, 0)),
            pl.BlockSpec((1, C), lambda i: (0, 0)),
        ],
        out_specs=pl.BlockSpec((1, TB, C), lambda i: (i, 0, 0)),
        compiler_params=pltpu.CompilerParams(dimension_semantics=("parallel",)),
    )(x, w1, b1, w2, b2)


def classifier_forward(x_nchw, p):
    """Equivalent of Classifier.forward (eval mode). x: (B, 1, 28, 28) f32."""
    B = x_nchw.shape[0]
    TB = max(1, min(TILE_B_MAX, (B + 1) // 2))   # >=2 parallel grid steps when B >= 2
    T = pl.cdiv(B, TB)
    pad = T * TB - B
    if pad:
        x_nchw = jnp.concatenate(
            [x_nchw, jnp.zeros((pad,) + x_nchw.shape[1:], x_nchw.dtype)], axis=0)

    # (T*TB, 1, 28, 28) -> (T, Cin=1, TB, 28, 28); bf16 operands for the MXU.
    x = x_nchw.reshape(T, TB, 1, 28, 28).transpose(0, 2, 1, 3, 4).astype(jnp.bfloat16)

    p1, hp1, wp1 = _pool_patches(x, 3)                              # (T, 4, 9, TB*169)
    y1 = _conv_relu_pool(p1, p["conv1_w"], p["conv1_b"])            # (T, 16, TB*169)
    y1 = y1.reshape(T, 16, TB, hp1, wp1).astype(jnp.bfloat16)

    p2, hp2, wp2 = _pool_patches(y1, 3)                             # (T, 4, 144, TB*25)
    y2 = _conv_relu_pool(p2, p["conv2_w"], p["conv2_b"])            # (T, 32, TB*25)

    # Per-image flatten in torch (C, H, W) order -> matches prepared fc1 layout.
    feats = (y2.reshape(T, 32, TB, hp2 * wp2)
               .transpose(0, 2, 1, 3)
               .reshape(T, TB, 32 * hp2 * wp2)
               .astype(jnp.bfloat16))                               # (T, TB, 800)

    out = _mlp_head(feats, p["fc1_w"], p["fc1_b"], p["fc2_w"], p["fc2_b"])
    return out.reshape(T * TB, -1)[:B]                              # (B, 10)


# -------------------------- params & reference ----------------------------- #

def init_params(key):
    """Torch-layout parameters (OIHW convs, (out,in) linears)."""
    ks = jax.random.split(key, 8)

    def u(k, shape, fan_in):
        bound = 1.0 / jnp.sqrt(float(fan_in))
        return jax.random.uniform(k, shape, jnp.float32, -bound, bound)

    return {
        "conv1_w": u(ks[0], (16, 1, 3, 3), 1 * 9),
        "conv1_b": u(ks[1], (16,), 1 * 9),
        "conv2_w": u(ks[2], (32, 16, 3, 3), 16 * 9),
        "conv2_b": u(ks[3], (32,), 16 * 9),
        "fc1_w": u(ks[4], (400, 800), 800),
        "fc1_b": u(ks[5], (400,), 800),
        "fc2_w": u(ks[6], (10, 400), 400),
        "fc2_b": u(ks[7], (10,), 400),
    }


def prepare_params(p):
    """One-time weight relayout/cast so the forward pass does no per-call relayouts."""
    return {
        # (O,1,3,3) -> (O, kh*kw), matching patch tap order (kh, kw, cin)
        "conv1_w": p["conv1_w"].reshape(16, 9).astype(jnp.bfloat16),
        "conv1_b": p["conv1_b"].reshape(16, 1).astype(jnp.float32),
        # (O,I,3,3) -> (O, kh, kw, I) -> (O, 144)
        "conv2_w": jnp.transpose(p["conv2_w"], (0, 2, 3, 1)).reshape(32, 144)
                      .astype(jnp.bfloat16),
        "conv2_b": p["conv2_b"].reshape(32, 1).astype(jnp.float32),
        # torch fc input order is (c, h, w) -> our flatten already matches; just transpose
        "fc1_w": p["fc1_w"].T.astype(jnp.bfloat16),                 # (800, 400)
        "fc1_b": p["fc1_b"].reshape(1, 400).astype(jnp.float32),
        "fc2_w": p["fc2_w"].T.astype(jnp.bfloat16),                 # (400, 10)
        "fc2_b": p["fc2_b"].reshape(1, 10).astype(jnp.float32),
    }


def reference_forward(x_nchw, p):
    """Pure-JAX f32 reference with torch semantics (eval mode)."""
    def conv(x, w, b):
        y = jax.lax.conv_general_dilated(x, w, (1, 1), "VALID",
                                         dimension_numbers=("NCHW", "OIHW", "NCHW"))
        return y + b[None, :, None, None]

    x = jax.nn.relu(conv(x_nchw, p["conv1_w"], p["conv1_b"]))
    x = jax.lax.reduce_window(x, -jnp.inf, jax.lax.max, (1, 1, 2, 2), (1, 1, 2, 2), "VALID")
    x = jax.nn.relu(conv(x, p["conv2_w"], p["conv2_b"]))
    x = jax.lax.reduce_window(x, -jnp.inf, jax.lax.max, (1, 1, 2, 2), (1, 1, 2, 2), "VALID")
    x = x.reshape(x.shape[0], -1)
    x = jax.nn.relu(x @ p["fc1_w"].T + p["fc1_b"])
    x = jax.nn.relu(x @ p["fc2_w"].T + p["fc2_b"])
    return jax.nn.log_softmax(x, axis=1)


if __name__ == "__main__":
    key = jax.random.PRNGKey(0)
    pkey, xkey = jax.random.split(key)
    params = init_params(pkey)
    prep = prepare_params(params)                       # one-time weight relayout
    x = jax.random.normal(xkey, (2, 1, 28, 28), jnp.float32)

    fwd = jax.jit(classifier_forward)
    out = jax.block_until_ready(fwd(x, prep))

    ref = reference_forward(x, params)
    assert out.shape == (2, 10), out.shape
    err = float(jnp.max(jnp.abs(out - ref)))
    # bf16 MXU operands (f32 accumulation) -> slightly relaxed tolerance vs f32 reference
    assert jnp.allclose(out, ref, atol=3e-2, rtol=3e-2), f"max abs err {err}"
    print("KERNEL_OK")
</pallas_src>

<mosaic_0001>
module attributes {stable_mosaic.version = 11 : i64} {
  func.func @_conv_pool_kernel(%arg0: i32, %arg1: memref<1x4x9x169xbf16, #tpu.memory_space<vmem>>, %arg2: memref<16x9xbf16, #tpu.memory_space<vmem>>, %arg3: memref<16x1xf32, #tpu.memory_space<vmem>>, %arg4: memref<1x16x169xf32, #tpu.memory_space<vmem>>) attributes {dimension_semantics = [#tpu.dimension_semantics<parallel>], iteration_bounds = array<i64: 2>, scalar_prefetch = 0 : i64, scratch_operands = 0 : i64, tpu.core_type = #tpu.core_type<tc>, window_params = [{transform_indices = @transform_0, window_bounds = array<i64: 1, 4, 9, 169>}, {pipeline_mode = #tpu.pipeline_mode<synchronous>, transform_indices = @transform_1, window_bounds = array<i64: 16, 9>}, {pipeline_mode = #tpu.pipeline_mode<synchronous>, transform_indices = @transform_2, window_bounds = array<i64: 16, 1>}, {transform_indices = @transform_3, window_bounds = array<i64: 1, 16, 169>}]} {
    %c0 = arith.constant 0 : index
    %c0_0 = arith.constant 0 : index
    %0 = vector.load %arg2[%c0, %c0_0] : memref<16x9xbf16, #tpu.memory_space<vmem>>, vector<16x9xbf16>
    %c0_1 = arith.constant 0 : index
    %c0_2 = arith.constant 0 : index
    %1 = vector.load %arg3[%c0_1, %c0_2] : memref<16x1xf32, #tpu.memory_space<vmem>>, vector<16x1xf32>
    %c0_3 = arith.constant 0 : index
    %c0_4 = arith.constant 0 : index
    %c0_5 = arith.constant 0 : index
    %c0_6 = arith.constant 0 : index
    %2 = vector.load %arg1[%c0_3, %c0_4, %c0_5, %c0_6] : memref<1x4x9x169xbf16, #tpu.memory_space<vmem>>, vector<1x1x9x169xbf16>
    %3 = vector.shape_cast %2 : vector<1x1x9x169xbf16> to vector<9x169xbf16>
    %cst = arith.constant dense<0.000000e+00> : vector<16x169xf32>
    %4 = tpu.matmul %0, %3, %cst {dimension_numbers = #tpu.dot_dimension_numbers<[1], [0], [0], [1], [0, 0, 1, 1], [], []>} : vector<16x9xbf16>, vector<9x169xbf16>, vector<16x169xf32> -> vector<16x169xf32>
    %5 = vector.broadcast %1 : vector<16x1xf32> to vector<16x169xf32>
    %6 = arith.addf %4, %5 : vector<16x169xf32>
    %cst_7 = arith.constant 0.000000e+00 : f32
    %7 = vector.broadcast %cst_7 : f32 to vector<16x169xf32>
    %8 = arith.maximumf %6, %7 : vector<16x169xf32>
    %c0_8 = arith.constant 0 : index
    %c1 = arith.constant 1 : index
    %c0_9 = arith.constant 0 : index
    %c0_10 = arith.constant 0 : index
    %9 = vector.load %arg1[%c0_8, %c1, %c0_9, %c0_10] : memref<1x4x9x169xbf16, #tpu.memory_space<vmem>>, vector<1x1x9x169xbf16>
    %10 = vector.shape_cast %9 : vector<1x1x9x169xbf16> to vector<9x169xbf16>
    %cst_11 = arith.constant dense<0.000000e+00> : vector<16x169xf32>
    %11 = tpu.matmul %0, %10, %cst_11 {dimension_numbers = #tpu.dot_dimension_numbers<[1], [0], [0], [1], [0, 0, 1, 1], [], []>} : vector<16x9xbf16>, vector<9x169xbf16>, vector<16x169xf32> -> vector<16x169xf32>
    %12 = vector.broadcast %1 : vector<16x1xf32> to vector<16x169xf32>
    %13 = arith.addf %11, %12 : vector<16x169xf32>
    %cst_12 = arith.constant 0.000000e+00 : f32
    %14 = vector.broadcast %cst_12 : f32 to vector<16x169xf32>
    %15 = arith.maximumf %13, %14 : vector<16x169xf32>
    %16 = arith.maximumf %8, %15 : vector<16x169xf32>
    %c0_13 = arith.constant 0 : index
    %c2 = arith.constant 2 : index
    %c0_14 = arith.constant 0 : index
    %c0_15 = arith.constant 0 : index
    %17 = vector.load %arg1[%c0_13, %c2, %c0_14, %c0_15] : memref<1x4x9x169xbf16, #tpu.memory_space<vmem>>, vector<1x1x9x169xbf16>
    %18 = vector.shape_cast %17 : vector<1x1x9x169xbf16> to vector<9x169xbf16>
    %cst_16 = arith.constant dense<0.000000e+00> : vector<16x169xf32>
    %19 = tpu.matmul %0, %18, %cst_16 {dimension_numbers = #tpu.dot_dimension_numbers<[1], [0], [0], [1], [0, 0, 1, 1], [], []>} : vector<16x9xbf16>, vector<9x169xbf16>, vector<16x169xf32> -> vector<16x169xf32>
    %20 = vector.broadcast %1 : vector<16x1xf32> to vector<16x169xf32>
    %21 = arith.addf %19, %20 : vector<16x169xf32>
    %cst_17 = arith.constant 0.000000e+00 : f32
    %22 = vector.broadcast %cst_17 : f32 to vector<16x169xf32>
    %23 = arith.maximumf %21, %22 : vector<16x169xf32>
    %24 = arith.maximumf %16, %23 : vector<16x169xf32>
    %c0_18 = arith.constant 0 : index
    %c3 = arith.constant 3 : index
    %c0_19 = arith.constant 0 : index
    %c0_20 = arith.constant 0 : index
    %25 = vector.load %arg1[%c0_18, %c3, %c0_19, %c0_20] : memref<1x4x9x169xbf16, #tpu.memory_space<vmem>>, vector<1x1x9x169xbf16>
    %26 = vector.shape_cast %25 : vector<1x1x9x169xbf16> to vector<9x169xbf16>
    %cst_21 = arith.constant dense<0.000000e+00> : vector<16x169xf32>
    %27 = tpu.matmul %0, %26, %cst_21 {dimension_numbers = #tpu.dot_dimension_numbers<[1], [0], [0], [1], [0, 0, 1, 1], [], []>} : vector<16x9xbf16>, vector<9x169xbf16>, vector<16x169xf32> -> vector<16x169xf32>
    %28 = vector.broadcast %1 : vector<16x1xf32> to vector<16x169xf32>
    %29 = arith.addf %27, %28 : vector<16x169xf32>
    %cst_22 = arith.constant 0.000000e+00 : f32
    %30 = vector.broadcast %cst_22 : f32 to vector<16x169xf32>
    %31 = arith.maximumf %29, %30 : vector<16x169xf32>
    %32 = arith.maximumf %24, %31 : vector<16x169xf32>
    %c0_23 = arith.constant 0 : index
    %c0_24 = arith.constant 0 : index
    %c0_25 = arith.constant 0 : index
    %33 = vector.load %arg4[%c0_23, %c0_24, %c0_25] : memref<1x16x169xf32, #tpu.memory_space<vmem>>, vector<1x16x169xf32>
    %34 = vector.shape_cast %33 : vector<1x16x169xf32> to vector<16x169xf32>
    %35 = vector.shape_cast %32 : vector<16x169xf32> to vector<1x16x169xf32>
    tpu.vector_store %arg4[%c0_23, %c0_24, %c0_25], %35 {strides = array<i32>} : memref<1x16x169xf32, #tpu.memory_space<vmem>>, vector<1x16x169xf32>,
    return
  }
  func.func @transform_0(%arg0: i32) -> (i32, i32, i32, i32) {
    %c0_i32 = arith.constant 0 : i32
    %c0_i32_0 = arith.constant 0 : i32
    %c0_i32_1 = arith.constant 0 : i32
    %c0_i32_2 = arith.constant 0 : i32
    return %arg0, %c0_i32, %c0_i32_0, %c0_i32_1 : i32, i32, i32, i32
  }
  func.func @transform_1(%arg0: i32) -> (i32, i32) {
    %c0_i32 = arith.constant 0 : i32
    %c0_i32_0 = arith.constant 0 : i32
    %c0_i32_1 = arith.constant 0 : i32
    return %c0_i32, %c0_i32_0 : i32, i32
  }
  func.func @transform_2(%arg0: i32) -> (i32, i32) {
    %c0_i32 = arith.constant 0 : i32
    %c0_i32_0 = arith.constant 0 : i32
    %c0_i32_1 = arith.constant 0 : i32
    return %c0_i32, %c0_i32_0 : i32, i32
  }
  func.func @transform_3(%arg0: i32) -> (i32, i32, i32) {
    %c0_i32 = arith.constant 0 : i32
    %c0_i32_0 = arith.constant 0 : i32
    %c0_i32_1 = arith.constant 0 : i32
    return %arg0, %c0_i32, %c0_i32_0 : i32, i32, i32
  }
}

module attributes {stable_mosaic.version = 11 : i64} {
  func.func @_conv_pool_kernel(%arg0: i32, %arg1: memref<1x4x144x25xbf16, #tpu.memory_space<vmem>>, %arg2: memref<32x144xbf16, #tpu.memory_space<vmem>>, %arg3: memref<32x1xf32, #tpu.memory_space<vmem>>, %arg4: memref<1x32x25xf32, #tpu.memory_space<vmem>>) attributes {dimension_semantics = [#tpu.dimension_semantics<parallel>], iteration_bounds = array<i64: 2>, scalar_prefetch = 0 : i64, scratch_operands = 0 : i64, tpu.core_type = #tpu.core_type<tc>, window_params = [{transform_indices = @transform_0, window_bounds = array<i64: 1, 4, 144, 25>}, {pipeline_mode = #tpu.pipeline_mode<synchronous>, transform_indices = @transform_1, window_bounds = array<i64: 32, 144>}, {pipeline_mode = #tpu.pipeline_mode<synchronous>, transform_indices = @transform_2, window_bounds = array<i64: 32, 1>}, {transform_indices = @transform_3, window_bounds = array<i64: 1, 32, 25>}]} {
    %c0 = arith.constant 0 : index
    %c0_0 = arith.constant 0 : index
    %0 = vector.load %arg2[%c0, %c0_0] : memref<32x144xbf16, #tpu.memory_space<vmem>>, vector<32x144xbf16>
    %c0_1 = arith.constant 0 : index
    %c0_2 = arith.constant 0 : index
    %1 = vector.load %arg3[%c0_1, %c0_2] : memref<32x1xf32, #tpu.memory_space<vmem>>, vector<32x1xf32>
    %c0_3 = arith.constant 0 : index
    %c0_4 = arith.constant 0 : index
    %c0_5 = arith.constant 0 : index
    %c0_6 = arith.constant 0 : index
    %2 = vector.load %arg1[%c0_3, %c0_4, %c0_5, %c0_6] : memref<1x4x144x25xbf16, #tpu.memory_space<vmem>>, vector<1x1x144x25xbf16>
    %3 = vector.shape_cast %2 : vector<1x1x144x25xbf16> to vector<144x25xbf16>
    %cst = arith.constant dense<0.000000e+00> : vector<32x25xf32>
    %4 = tpu.matmul %0, %3, %cst {dimension_numbers = #tpu.dot_dimension_numbers<[1], [0], [0], [1], [0, 0, 1, 1], [], []>} : vector<32x144xbf16>, vector<144x25xbf16>, vector<32x25xf32> -> vector<32x25xf32>
    %5 = vector.broadcast %1 : vector<32x1xf32> to vector<32x25xf32>
    %6 = arith.addf %4, %5 : vector<32x25xf32>
    %cst_7 = arith.constant 0.000000e+00 : f32
    %7 = vector.broadcast %cst_7 : f32 to vector<32x25xf32>
    %8 = arith.maximumf %6, %7 : vector<32x25xf32>
    %c0_8 = arith.constant 0 : index
    %c1 = arith.constant 1 : index
    %c0_9 = arith.constant 0 : index
    %c0_10 = arith.constant 0 : index
    %9 = vector.load %arg1[%c0_8, %c1, %c0_9, %c0_10] : memref<1x4x144x25xbf16, #tpu.memory_space<vmem>>, vector<1x1x144x25xbf16>
    %10 = vector.shape_cast %9 : vector<1x1x144x25xbf16> to vector<144x25xbf16>
    %cst_11 = arith.constant dense<0.000000e+00> : vector<32x25xf32>
    %11 = tpu.matmul %0, %10, %cst_11 {dimension_numbers = #tpu.dot_dimension_numbers<[1], [0], [0], [1], [0, 0, 1, 1], [], []>} : vector<32x144xbf16>, vector<144x25xbf16>, vector<32x25xf32> -> vector<32x25xf32>
    %12 = vector.broadcast %1 : vector<32x1xf32> to vector<32x25xf32>
    %13 = arith.addf %11, %12 : vector<32x25xf32>
    %cst_12 = arith.constant 0.000000e+00 : f32
    %14 = vector.broadcast %cst_12 : f32 to vector<32x25xf32>
    %15 = arith.maximumf %13, %14 : vector<32x25xf32>
    %16 = arith.maximumf %8, %15 : vector<32x25xf32>
    %c0_13 = arith.constant 0 : index
    %c2 = arith.constant 2 : index
    %c0_14 = arith.constant 0 : index
    %c0_15 = arith.constant 0 : index
    %17 = vector.load %arg1[%c0_13, %c2, %c0_14, %c0_15] : memref<1x4x144x25xbf16, #tpu.memory_space<vmem>>, vector<1x1x144x25xbf16>
    %18 = vector.shape_cast %17 : vector<1x1x144x25xbf16> to vector<144x25xbf16>
    %cst_16 = arith.constant dense<0.000000e+00> : vector<32x25xf32>
    %19 = tpu.matmul %0, %18, %cst_16 {dimension_numbers = #tpu.dot_dimension_numbers<[1], [0], [0], [1], [0, 0, 1, 1], [], []>} : vector<32x144xbf16>, vector<144x25xbf16>, vector<32x25xf32> -> vector<32x25xf32>
    %20 = vector.broadcast %1 : vector<32x1xf32> to vector<32x25xf32>
    %21 = arith.addf %19, %20 : vector<32x25xf32>
    %cst_17 = arith.constant 0.000000e+00 : f32
    %22 = vector.broadcast %cst_17 : f32 to vector<32x25xf32>
    %23 = arith.maximumf %21, %22 : vector<32x25xf32>
    %24 = arith.maximumf %16, %23 : vector<32x25xf32>
    %c0_18 = arith.constant 0 : index
    %c3 = arith.constant 3 : index
    %c0_19 = arith.constant 0 : index
    %c0_20 = arith.constant 0 : index
    %25 = vector.load %arg1[%c0_18, %c3, %c0_19, %c0_20] : memref<1x4x144x25xbf16, #tpu.memory_space<vmem>>, vector<1x1x144x25xbf16>
    %26 = vector.shape_cast %25 : vector<1x1x144x25xbf16> to vector<144x25xbf16>
    %cst_21 = arith.constant dense<0.000000e+00> : vector<32x25xf32>
    %27 = tpu.matmul %0, %26, %cst_21 {dimension_numbers = #tpu.dot_dimension_numbers<[1], [0], [0], [1], [0, 0, 1, 1], [], []>} : vector<32x144xbf16>, vector<144x25xbf16>, vector<32x25xf32> -> vector<32x25xf32>
    %28 = vector.broadcast %1 : vector<32x1xf32> to vector<32x25xf32>
    %29 = arith.addf %27, %28 : vector<32x25xf32>
    %cst_22 = arith.constant 0.000000e+00 : f32
    %30 = vector.broadcast %cst_22 : f32 to vector<32x25xf32>
    %31 = arith.maximumf %29, %30 : vector<32x25xf32>
    %32 = arith.maximumf %24, %31 : vector<32x25xf32>
    %c0_23 = arith.constant 0 : index
    %c0_24 = arith.constant 0 : index
    %c0_25 = arith.constant 0 : index
    %33 = vector.load %arg4[%c0_23, %c0_24, %c0_25] : memref<1x32x25xf32, #tpu.memory_space<vmem>>, vector<1x32x25xf32>
    %34 = vector.shape_cast %33 : vector<1x32x25xf32> to vector<32x25xf32>
    %35 = vector.shape_cast %32 : vector<32x25xf32> to vector<1x32x25xf32>
    tpu.vector_store %arg4[%c0_23, %c0_24, %c0_25], %35 {strides = array<i32>} : memref<1x32x25xf32, #tpu.memory_space<vmem>>, vector<1x32x25xf32>,
    return
  }
  func.func @transform_0(%arg0: i32) -> (i32, i32, i32, i32) {
    %c0_i32 = arith.constant 0 : i32
    %c0_i32_0 = arith.constant 0 : i32
    %c0_i32_1 = arith.constant 0 : i32
    %c0_i32_2 = arith.constant 0 : i32
    return %arg0, %c0_i32, %c0_i32_0, %c0_i32_1 : i32, i32, i32, i32
  }
  func.func @transform_1(%arg0: i32) -> (i32, i32) {
    %c0_i32 = arith.constant 0 : i32
    %c0_i32_0 = arith.constant 0 : i32
    %c0_i32_1 = arith.constant 0 : i32
    return %c0_i32, %c0_i32_0 : i32, i32
  }
  func.func @transform_2(%arg0: i32) -> (i32, i32) {
    %c0_i32 = arith.constant 0 : i32
    %c0_i32_0 = arith.constant 0 : i32
    %c0_i32_1 = arith.constant 0 : i32
    return %c0_i32, %c0_i32_0 : i32, i32
  }
  func.func @transform_3(%arg0: i32) -> (i32, i32, i32) {
    %c0_i32 = arith.constant 0 : i32
    %c0_i32_0 = arith.constant 0 : i32
    %c0_i32_1 = arith.constant 0 : i32
    return %arg0, %c0_i32, %c0_i32_0 : i32, i32, i32
  }
}

module attributes {stable_mosaic.version = 11 : i64} {
  func.func @_mlp_head_kernel(%arg0: i32, %arg1: memref<1x1x800xbf16, #tpu.memory_space<vmem>>, %arg2: memref<800x400xbf16, #tpu.memory_space<vmem>>, %arg3: memref<1x400xf32, #tpu.memory_space<vmem>>, %arg4: memref<400x10xbf16, #tpu.memory_space<vmem>>, %arg5: memref<1x10xf32, #tpu.memory_space<vmem>>, %arg6: memref<1x1x10xf32, #tpu.memory_space<vmem>>) attributes {dimension_semantics = [#tpu.dimension_semantics<parallel>], iteration_bounds = array<i64: 2>, scalar_prefetch = 0 : i64, scratch_operands = 0 : i64, tpu.core_type = #tpu.core_type<tc>, window_params = [{transform_indices = @transform_0, window_bounds = array<i64: 1, 1, 800>}, {pipeline_mode = #tpu.pipeline_mode<synchronous>, transform_indices = @transform_1, window_bounds = array<i64: 800, 400>}, {pipeline_mode = #tpu.pipeline_mode<synchronous>, transform_indices = @transform_2, window_bounds = array<i64: 1, 400>}, {pipeline_mode = #tpu.pipeline_mode<synchronous>, transform_indices = @transform_3, window_bounds = array<i64: 400, 10>}, {pipeline_mode = #tpu.pipeline_mode<synchronous>, transform_indices = @transform_4, window_bounds = array<i64: 1, 10>}, {transform_indices = @transform_5, window_bounds = array<i64: 1, 1, 10>}]} {
    %c0 = arith.constant 0 : index
    %c0_0 = arith.constant 0 : index
    %c0_1 = arith.constant 0 : index
    %0 = vector.load %arg1[%c0, %c0_0, %c0_1] : memref<1x1x800xbf16, #tpu.memory_space<vmem>>, vector<1x1x800xbf16>
    %1 = vector.shape_cast %0 : vector<1x1x800xbf16> to vector<1x800xbf16>
    %c0_2 = arith.constant 0 : index
    %c0_3 = arith.constant 0 : index
    %2 = vector.load %arg2[%c0_2, %c0_3] : memref<800x400xbf16, #tpu.memory_space<vmem>>, vector<800x400xbf16>
    %cst = arith.constant dense<0.000000e+00> : vector<1x400xf32>
    %3 = tpu.matmul %1, %2, %cst {dimension_numbers = #tpu.dot_dimension_numbers<[1], [0], [0], [1], [0, 0, 1, 1], [], []>} : vector<1x800xbf16>, vector<800x400xbf16>, vector<1x400xf32> -> vector<1x400xf32>
    %c0_4 = arith.constant 0 : index
    %c0_5 = arith.constant 0 : index
    %4 = vector.load %arg3[%c0_4, %c0_5] : memref<1x400xf32, #tpu.memory_space<vmem>>, vector<1x400xf32>
    %5 = arith.addf %3, %4 : vector<1x400xf32>
    %cst_6 = arith.constant 0.000000e+00 : f32
    %6 = vector.broadcast %cst_6 : f32 to vector<1x400xf32>
    %7 = arith.maximumf %5, %6 : vector<1x400xf32>
    %8 = arith.truncf %7 : vector<1x400xf32> to vector<1x400xbf16>
    %c0_7 = arith.constant 0 : index
    %c0_8 = arith.constant 0 : index
    %9 = vector.load %arg4[%c0_7, %c0_8] : memref<400x10xbf16, #tpu.memory_space<vmem>>, vector<400x10xbf16>
    %cst_9 = arith.constant dense<0.000000e+00> : vector<1x10xf32>
    %10 = tpu.matmul %8, %9, %cst_9 {dimension_numbers = #tpu.dot_dimension_numbers<[1], [0], [0], [1], [0, 0, 1, 1], [], []>} : vector<1x400xbf16>, vector<400x10xbf16>, vector<1x10xf32> -> vector<1x10xf32>
    %c0_10 = arith.constant 0 : index
    %c0_11 = arith.constant 0 : index
    %11 = vector.load %arg5[%c0_10, %c0_11] : memref<1x10xf32, #tpu.memory_space<vmem>>, vector<1x10xf32>
    %12 = arith.addf %10, %11 : vector<1x10xf32>
    %cst_12 = arith.constant 0.000000e+00 : f32
    %13 = vector.broadcast %cst_12 : f32 to vector<1x10xf32>
    %14 = arith.maximumf %12, %13 : vector<1x10xf32>
    %cst_13 = arith.constant dense<0xFF800000> : vector<1xf32>
    %15 = vector.multi_reduction <maximumf>, %14, %cst_13 [1] : vector<1x10xf32> to vector<1xf32>
    %16 = vector.shape_cast %15 : vector<1xf32> to vector<1x1xf32>
    %17 = vector.broadcast %16 : vector<1x1xf32> to vector<1x10xf32>
    %18 = arith.subf %14, %17 : vector<1x10xf32>
    %19 = math.exp %18 : vector<1x10xf32>
    %cst_14 = arith.constant dense<0.000000e+00> : vector<1xf32>
    %20 = vector.multi_reduction <add>, %19, %cst_14 [1] : vector<1x10xf32> to vector<1xf32>
    %21 = vector.shape_cast %20 : vector<1xf32> to vector<1x1xf32>
    %22 = math.log %21 : vector<1x1xf32>
    %23 = arith.addf %16, %22 : vector<1x1xf32>
    %24 = vector.broadcast %23 : vector<1x1xf32> to vector<1x10xf32>
    %25 = arith.subf %14, %24 : vector<1x10xf32>
    %c0_15 = arith.constant 0 : index
    %c0_16 = arith.constant 0 : index
    %c0_17 = arith.constant 0 : index
    %26 = vector.load %arg6[%c0_15, %c0_16, %c0_17] : memref<1x1x10xf32, #tpu.memory_space<vmem>>, vector<1x1x10xf32>
    %27 = vector.shape_cast %26 : vector<1x1x10xf32> to vector<1x10xf32>
    %28 = vector.shape_cast %25 : vector<1x10xf32> to vector<1x1x10xf32>
    tpu.vector_store %arg6[%c0_15, %c0_16, %c0_17], %28 {strides = array<i32>} : memref<1x1x10xf32, #tpu.memory_space<vmem>>, vector<1x1x10xf32>,
    return
  }
  func.func @transform_0(%arg0: i32) -> (i32, i32, i32) {
    %c0_i32 = arith.constant 0 : i32
    %c0_i32_0 = arith.constant 0 : i32
    %c0_i32_1 = arith.constant 0 : i32
    return %arg0, %c0_i32, %c0_i32_0 : i32, i32, i32
  }
  func.func @transform_1(%arg0: i32) -> (i32, i32) {
    %c0_i32 = arith.constant 0 : i32
    %c0_i32_0 = arith.constant 0 : i32
    %c0_i32_1 = arith.constant 0 : i32
    return %c0_i32, %c0_i32_0 : i32, i32
  }
  func.func @transform_2(%arg0: i32) -> (i32, i32) {
    %c0_i32 = arith.constant 0 : i32
    %c0_i32_0 = arith.constant 0 : i32
    %c0_i32_1 = arith.constant 0 : i32
    return %c0_i32, %c0_i32_0 : i32, i32
  }
  func.func @transform_3(%arg0: i32) -> (i32, i32) {
    %c0_i32 = arith.constant 0 : i32
    %c0_i32_0 = arith.constant 0 : i32
    %c0_i32_1 = arith.constant 0 : i32
    return %c0_i32, %c0_i32_0 : i32, i32
  }
  func.func @transform_4(%arg0: i32) -> (i32, i32) {
    %c0_i32 = arith.constant 0 : i32
    %c0_i32_0 = arith.constant 0 : i32
    %c0_i32_1 = arith.constant 0 : i32
    return %c0_i32, %c0_i32_0 : i32, i32
  }
  func.func @transform_5(%arg0: i32) -> (i32, i32, i32) {
    %c0_i32 = arith.constant 0 : i32
    %c0_i32_0 = arith.constant 0 : i32
    %c0_i32_1 = arith.constant 0 : i32
    return %arg0, %c0_i32, %c0_i32_0 : i32, i32, i32
  }
}

</mosaic_0001>

<llo_original>
// kernel: classifier_forward.3
$region0: #{classifier_forward.3}
  #allocation0 [shape = 'u32[]', space=smem, size = 0x4, offset = 0x4, fixed_abs, tag = 'smem constant byte address 0x4 - core index']
  #allocation1 [shape = 'u32[72,128]{1,0:T(1,128)}', space=vmem, size = 0x9000, scoped, tag = 'internal scratch']
  %s0 = inlined_call_operand.vmem [shape: bf16[2,4,9,169], index: 0, kind: input, shape index: {}]
  %s1 = inlined_call_operand.vmem [shape: bf16[16,9], index: 1, kind: input, shape index: {}]
  %s2 = inlined_call_operand.vmem [shape: f32[16,1], index: 2, kind: input, shape index: {}]
  %s3 = inlined_call_operand.vmem [shape: f32[2,16,169], index: 3, kind: output, shape index: {}]
  %s4 = sld [smem:[#allocation0]]
  $region45: #{classifier_forward.3} parent=0
    _
  %s6 = ssub.s32 1, %s4
  %s7 = scalar_select 0, %s6, %s4
  loop: start=0, step=1, limit=4
  $region2: #{classifier_forward.3} parent=0 // loop_pre_header
    _
  $region3: #{classifier_forward.3} parent=0 // loop_header
    %s9 = sphi 0, %s13
    %p10 = scmp.ge.s32.totalorder %s9, 4
    %s19 = sphi 0, %s21
    %s22 = sphi 0, %s19
    %s23 = sphi 0, %s22
    %s39 = sphi 0, %s23
    %s43 = sphi 0, %s43
    %s45 = sphi 0, %s43
    %s46 = sphi 0, %s45
    %s60 = sphi 0, %s46
    %s64 = sphi 0, %s64
    %s66 = sphi 0, %s64
    %s67 = sphi 0, %s66
    %s81 = sphi 0, %s67
    %s87 = sphi 0, %s89
    %s90 = sphi 0, %s87
    %s91 = sphi 0, %s90
    %s107 = sphi 0, %s91
  $region4: #{classifier_forward.3} parent=0 // loop_header_branch
    %12 = sbr.rel (%p10) target = $region8
  $region5: #{classifier_forward.3} parent=0 // loop_body
    %s14 = ssub.s32 %s9, 1
    %s15 = ssub.s32 %s9, 2
    %s16 = sadd.s32 %s9, 1
    %s17 = ssub.s32 %s9, %s16
    %p18 = scmp.eq.s32.totalorder %s17, 0
    %s20 = sadd.s32 %s19, 1
    %s21 = scalar_select %p18, %s19, %s20
    %p24 = pneg %p18
    %p25 = scmp.eq.s32.totalorder %s9, 1
    %p26 = por %p24, %p25
    %p27 = scmp.ne.s32.totalorder %s19, %s22
    %p28 = scmp.eq.s32.totalorder %s9, 0
    %p29 = por %p27, %p28
    %p30 = scmp.ne.s32.totalorder %s19, %s22
    %p31 = scmp.eq.s32.totalorder %s14, 1
    %p32 = por %p30, %p31
    %p33 = scmp.ne.s32.totalorder %s22, %s23
    %p34 = scmp.eq.s32.totalorder %s14, 0
    %p35 = por %p33, %p34
    %p36 = scmp.ne.s32.totalorder %s22, %s23
    %p37 = scmp.eq.s32.totalorder %s15, 1
    %p38 = por %p36, %p37
    %p40 = scmp.ne.s32.totalorder %s23, %s39
    %p41 = scmp.eq.s32.totalorder %s15, 0
    %p42 = por %p40, %p41
    %s44 = sadd.s32 %s43, 1
    %p47 = scmp.eq.s32.totalorder %s9, 1
    %p48 = scmp.ne.s32.totalorder %s43, %s45
    %p49 = scmp.eq.s32.totalorder %s9, 0
    %p50 = por %p48, %p49
    %p51 = scmp.ne.s32.totalorder %s43, %s45
    %p52 = scmp.eq.s32.totalorder %s14, 1
    %p53 = por %p51, %p52
    %p54 = scmp.ne.s32.totalorder %s45, %s46
    %p55 = scmp.eq.s32.totalorder %s14, 0
    %p56 = por %p54, %p55
    %p57 = scmp.ne.s32.totalorder %s45, %s46
    %p58 = scmp.eq.s32.totalorder %s15, 1
    %p59 = por %p57, %p58
    %p61 = scmp.ne.s32.totalorder %s46, %s60
    %p62 = scmp.eq.s32.totalorder %s15, 0
    %p63 = por %p61, %p62
    %s65 = sadd.s32 %s64, 1
    %p68 = scmp.eq.s32.totalorder %s9, 1
    %p69 = scmp.ne.s32.totalorder %s64, %s66
    %p70 = scmp.eq.s32.totalorder %s9, 0
    %p71 = por %p69, %p70
    %p72 = scmp.ne.s32.totalorder %s64, %s66
    %p73 = scmp.eq.s32.totalorder %s14, 1
    %p74 = por %p72, %p73
    %p75 = scmp.ne.s32.totalorder %s66, %s67
    %p76 = scmp.eq.s32.totalorder %s14, 0
    %p77 = por %p75, %p76
    %p78 = scmp.ne.s32.totalorder %s66, %s67
    %p79 = scmp.eq.s32.totalorder %s15, 1
    %p80 = por %p78, %p79
    %p82 = scmp.ne.s32.totalorder %s67, %s81
    %p83 = scmp.eq.s32.totalorder %s15, 0
    %p84 = por %p82, %p83
    %s85 = ssub.s32 %s9, %s16
    %p86 = scmp.eq.s32.totalorder %s85, 0
    %s88 = sadd.s32 %s87, 1
    %s89 = scalar_select %p86, %s87, %s88
    %p92 = pneg %p86
    %p93 = scmp.eq.s32.totalorder %s9, 1
    %p94 = por %p92, %p93
    %p95 = scmp.ne.s32.totalorder %s87, %s90
    %p96 = scmp.eq.s32.totalorder %s9, 0
    %p97 = por %p95, %p96
    %p98 = scmp.ne.s32.totalorder %s87, %s90
    %p99 = scmp.eq.s32.totalorder %s14, 1
    %p100 = por %p98, %p99
    %p101 = scmp.ne.s32.totalorder %s90, %s91
    %p102 = scmp.eq.s32.totalorder %s14, 0
    %p103 = por %p101, %p102
    %p104 = scmp.ne.s32.totalorder %s90, %s91
    %p105 = scmp.eq.s32.totalorder %s15, 1
    %p106 = por %p104, %p105
    %p108 = scmp.ne.s32.totalorder %s91, %s107
    %p109 = scmp.eq.s32.totalorder %s15, 0
    %p110 = por %p108, %p109
    %p111 = scmp.le.s32.totalorder 1, %s9
    %p112 = scmp.lt.s32.totalorder %s9, 3
    %p113 = pnand %p111, %p112
    %p114 = pneg %p113
    // Predicated region
    $region9: #{classifier_forward.3} parent=5 // pred_check
      _
    $region10: #{classifier_forward.3} parent=5 // pred_check_branch
      %116 = sbr.rel (%p113) target = $region12
    $region11: #{classifier_forward.3} parent=5 // pred_region
      %s117 = ssub.s32 %s9, 1
      // Predicated region
      $region13: #{classifier_forward.3} parent=11 // pred_check
        %p118 = pneg %p56
      $region14: #{classifier_forward.3} parent=11 // pred_check_branch
        %120 = sbr.rel (%p118) target = $region16
      $region15: #{classifier_forward.3} parent=11 // pred_region
        _
      $region16: #{classifier_forward.3} parent=11 // pred_fallthru
        _
      // Predicated region
      $region17: #{classifier_forward.3} parent=11 // pred_check
        %p121 = pneg %p77
      $region18: #{classifier_forward.3} parent=11 // pred_check_branch
        %123 = sbr.rel (%p121) target = $region20
      $region19: #{classifier_forward.3} parent=11 // pred_region
        _
      $region20: #{classifier_forward.3} parent=11 // pred_fallthru
        _
    $region12: #{classifier_forward.3} parent=5 // pred_fallthru
      _
    %p124 = scmp.lt.s32.totalorder %s9, 2
    // Predicated region
    $region21: #{classifier_forward.3} parent=5 // pred_check
      %p125 = pneg %p124
    $region22: #{classifier_forward.3} parent=5 // pred_check_branch
      %127 = sbr.rel (%p125) target = $region24
    $region23: #{classifier_forward.3} parent=5 // pred_region
      // Predicated region
      $region25: #{classifier_forward.3} parent=23 // pred_check
        %p128 = pneg %p29
      $region26: #{classifier_forward.3} parent=23 // pred_check_branch
        %130 = sbr.rel (%p128) target = $region28
      $region27: #{classifier_forward.3} parent=23 // pred_region
        %p131 = scmp.lt.s32.totalorder %s9, 1
        %s132 = scalar_select %p131, %s9, 1
        %s133 = smul.addr %s132, 16
        %s134 = smul.addr %s133, 4
        %s135 = scalar_lea.vmem %s0, %s134
      $region28: #{classifier_forward.3} parent=23 // pred_fallthru
        _
    $region24: #{classifier_forward.3} parent=5 // pred_fallthru
      _
    %p136 = scmp.le.s32.totalorder 1, %s9
    %p137 = scmp.lt.s32.totalorder %s9, 3
    %p138 = pnand %p136, %p137
    %p139 = pneg %p138
    // Predicated region
    $region29: #{classifier_forward.3} parent=5 // pred_check
      _
    $region30: #{classifier_forward.3} parent=5 // pred_check_branch
      %141 = sbr.rel (%p138) target = $region32
    $region31: #{classifier_forward.3} parent=5 // pred_region
      %s142 = ssub.s32 %s9, 1
      %p143 = scmp.lt.s32.totalorder %s14, 1
      %s144 = scalar_select %p143, %s14, 1
      %s145 = smul.addr %s144, 16
      %s146 = smul.addr %s145, 4
      %s147 = scalar_lea.vmem %s0, %s146
      %p148 = pneg %p35
      %p149 = pneg %p32
      %p150 = pneg %p56
      %p151 = pneg %p53
      %p152 = pneg %p77
      %p153 = pneg %p74
      %p154 = pneg %p103
      %p155 = pneg %p100
      %p156 = scmp.lt.s32.totalorder %s14, 1
      %s157 = scalar_select %p156, %s14, 1
      %s158 = smul.addr %s157, 4
      %s159 = smul.addr %s158, 8
      %s160 = scalar_lea.vmem %s3, %s159
      %p161 = scmp.lt.s32.totalorder %s14, 1
      %s162 = scalar_select %p161, %s14, 1
      %s163 = smul.addr %s162, 16
      %s164 = smul.addr %s163, 4
      %s165 = scalar_lea.vmem %s0, %s164
      %p166 = scmp.lt.s32.totalorder %s14, 1
      %s167 = scalar_select %p166, %s14, 1
      %s168 = smul.addr %s167, 4
      %s169 = smul.addr %s168, 8
      %s170 = scalar_lea.vmem %s3, %s169
      %v172 = vld [vmem:[%s1] sm:$0xf]
      %v173 = vld [vmem:[%s1 + $0x4] sm:$0xf]
      %v174 = vld [vmem:[%s2] sm:$0xff]
      %v175 = vld [vmem:[%s2 + $0x8] sm:$0xff]
      %v176 = vld [vmem:[%s165] sm:$0xff]
      %v177 = vld [vmem:[%s165 + $0x8] sm:$0x11]
      %179 = vset.pattern.permute.xlu0 0
      %180 = vperm.xlu0 %179, %v174
      %v181 = vpop.permute.xlu0 %180
      %184 = vset.pattern.permute.xlu0 0
      %185 = vperm.xlu0 %184, %v175
      %v186 = vpop.permute.xlu0 %185
      %v190 = vunpack.c.l.b16 %v172
      %v191 = vunpack.c.l.b16 %v173
      %v192 = vpack.c.b16 %v191, %v190
      %v195 = vunpack.c.l.b16 %v176
      %v196 = vunpack.c.h.b16 %v176
      %v197 = vunpack.c.l.b16 %v177
      %v198 = vunpack.c.h.b16 %v177
      %v199 = vpack.c.b16 %v197, %v195
      %v200 = vpack.c.b16 %v198, %v196
      %vm201 = vcmask 72704
      %v203 = vsel %vm201, %v192, 0
      %vm205 = vcmask 1043456
      %vm206 = vcmask 1044480
      %v207 = vsel %vm205, 4294967295, 65535
      %v208 = vsel %vm206, %v207, 0
      %v210 = vand.u32 %v199, %v208
      %v213 = vand.u32 %v200, %v208
      %215 = vmatpush.bf16.msra.mxu0 0
      %216 = vmatpush.bf16.msra.mxu0 0
      %217 = vmatpush.bf16.msra.mxu0 0
      %218 = vmatpush.bf16.msra.mxu0 0
      %219 = vmatpush.bf16.msra.mxu0 0
      %220 = vmatpush.bf16.msra.mxu0 0
      %221 = vmatpush.bf16.msra.mxu0 0
      %222 = vmatpush.bf16.msra.mxu0 %v210
      %223 = vmatmul.bf16.gmra.mxu0 %v203
      %v224 = vpop.f32.mrf.mxu0
      %v225 = vadd.f32 %v181, %v224
      %v226 = vpop.f32.mrf.mxu0
      %v227 = vadd.f32 %v186, %v226
      %228 = vdwg.mxu0
      %229 = vmatpush.bf16.msra.mxu0 0
      %230 = vmatpush.bf16.msra.mxu0 0
      %231 = vmatpush.bf16.msra.mxu0 0
      %232 = vmatpush.bf16.msra.mxu0 0
      %233 = vmatpush.bf16.msra.mxu0 0
      %234 = vmatpush.bf16.msra.mxu0 0
      %235 = vmatpush.bf16.msra.mxu0 0
      %236 = vmatpush.bf16.msra.mxu0 %v213
      %237 = vmatmul.bf16.gmra.mxu0 %v203
      %v238 = vpop.f32.mrf.mxu0
      %v239 = vadd.f32 %v181, %v238
      %v240 = vpop.f32.mrf.mxu0
      %v241 = vadd.f32 %v186, %v240
      %242 = vdwg.mxu0
      %v243 = vmax.f32 %v225, 0.0
      %v244 = vmax.f32 %v239, 0.0
      %v245 = vmax.f32 %v227, 0.0
      %v246 = vmax.f32 %v241, 0.0
      %s247 = scalar_lea.vmem %s165, 16
      %v248 = vld [vmem:[%s247] sm:$0xff]
      %v249 = vld [vmem:[%s247 + $0x8] sm:$0x11]
      %v252 = vunpack.c.l.b16 %v248
      %v253 = vunpack.c.h.b16 %v248
      %v254 = vunpack.c.l.b16 %v249
      %v255 = vunpack.c.h.b16 %v249
      %v256 = vpack.c.b16 %v254, %v252
      %v257 = vpack.c.b16 %v255, %v253
      %v259 = vand.u32 %v256, %v208
      %v262 = vand.u32 %v257, %v208
      %264 = vmatpush.bf16.msra.mxu0 0
      %265 = vmatpush.bf16.msra.mxu0 0
      %266 = vmatpush.bf16.msra.mxu0 0
      %267 = vmatpush.bf16.msra.mxu0 0
      %268 = vmatpush.bf16.msra.mxu0 0
      %269 = vmatpush.bf16.msra.mxu0 0
      %270 = vmatpush.bf16.msra.mxu0 0
      %271 = vmatpush.bf16.msra.mxu0 %v259
      %272 = vmatmul.bf16.gmra.mxu0 %v203
      %v273 = vpop.f32.mrf.mxu0
      %v274 = vadd.f32 %v181, %v273
      %v275 = vpop.f32.mrf.mxu0
      %v276 = vadd.f32 %v186, %v275
      %277 = vdwg.mxu0
      %278 = vmatpush.bf16.msra.mxu0 0
      %279 = vmatpush.bf16.msra.mxu0 0
      %280 = vmatpush.bf16.msra.mxu0 0
      %281 = vmatpush.bf16.msra.mxu0 0
      %282 = vmatpush.bf16.msra.mxu0 0
      %283 = vmatpush.bf16.msra.mxu0 0
      %284 = vmatpush.bf16.msra.mxu0 0
      %285 = vmatpush.bf16.msra.mxu0 %v262
      %286 = vmatmul.bf16.gmra.mxu0 %v203
      %v287 = vpop.f32.mrf.mxu0
      %v288 = vadd.f32 %v181, %v287
      %v289 = vpop.f32.mrf.mxu0
      %v290 = vadd.f32 %v186, %v289
      %291 = vdwg.mxu0
      %v292 = vmax.f32 %v274, 0.0
      %v293 = vmax.f32 %v288, 0.0
      %v294 = vmax.f32 %v276, 0.0
      %v295 = vmax.f32 %v290, 0.0
      %v296 = vmax.f32 %v243, %v292
      %v297 = vmax.f32 %v244, %v293
      %v298 = vmax.f32 %v245, %v294
      %v299 = vmax.f32 %v246, %v295
      %s300 = scalar_lea.vmem %s165, 32
      %v301 = vld [vmem:[%s300] sm:$0xff]
      %v302 = vld [vmem:[%s300 + $0x8] sm:$0x11]
      %v305 = vunpack.c.l.b16 %v301
      %v306 = vunpack.c.h.b16 %v301
      %v307 = vunpack.c.l.b16 %v302
      %v308 = vunpack.c.h.b16 %v302
      %v309 = vpack.c.b16 %v307, %v305
      %v310 = vpack.c.b16 %v308, %v306
      %v312 = vand.u32 %v309, %v208
      %v315 = vand.u32 %v310, %v208
      %317 = vmatpush.bf16.msra.mxu0 0
      %318 = vmatpush.bf16.msra.mxu0 0
      %319 = vmatpush.bf16.msra.mxu0 0
      %320 = vmatpush.bf16.msra.mxu0 0
      %321 = vmatpush.bf16.msra.mxu0 0
      %322 = vmatpush.bf16.msra.mxu0 0
      %323 = vmatpush.bf16.msra.mxu0 0
      %324 = vmatpush.bf16.msra.mxu0 %v312
      %325 = vmatmul.bf16.gmra.mxu0 %v203
      %v326 = vpop.f32.mrf.mxu0
      %v327 = vadd.f32 %v181, %v326
      %v328 = vpop.f32.mrf.mxu0
      %v329 = vadd.f32 %v186, %v328
      %330 = vdwg.mxu0
      %331 = vmatpush.bf16.msra.mxu0 0
      %332 = vmatpush.bf16.msra.mxu0 0
      %333 = vmatpush.bf16.msra.mxu0 0
      %334 = vmatpush.bf16.msra.mxu0 0
      %335 = vmatpush.bf16.msra.mxu0 0
      %336 = vmatpush.bf16.msra.mxu0 0
      %337 = vmatpush.bf16.msra.mxu0 0
      %338 = vmatpush.bf16.msra.mxu0 %v315
      %339 = vmatmul.bf16.gmra.mxu0 %v203
      %v340 = vpop.f32.mrf.mxu0
      %v341 = vadd.f32 %v181, %v340
      %v342 = vpop.f32.mrf.mxu0
      %v343 = vadd.f32 %v186, %v342
      %344 = vdwg.mxu0
      %v345 = vmax.f32 %v327, 0.0
      %v346 = vmax.f32 %v341, 0.0
      %v347 = vmax.f32 %v329, 0.0
      %v348 = vmax.f32 %v343, 0.0
      %v349 = vmax.f32 %v296, %v345
      %v350 = vmax.f32 %v297, %v346
      %v351 = vmax.f32 %v298, %v347
      %v352 = vmax.f32 %v299, %v348
      %s353 = scalar_lea.vmem %s165, 48
      %v354 = vld [vmem:[%s353] sm:$0xff]
      %v355 = vld [vmem:[%s353 + $0x8] sm:$0x11]
      %v358 = vunpack.c.l.b16 %v354
      %v359 = vunpack.c.h.b16 %v354
      %v360 = vunpack.c.l.b16 %v355
      %v361 = vunpack.c.h.b16 %v355
      %v362 = vpack.c.b16 %v360, %v358
      %v363 = vpack.c.b16 %v361, %v359
      %v365 = vand.u32 %v362, %v208
      %v368 = vand.u32 %v363, %v208
      %370 = vmatpush.bf16.msra.mxu0 0
      %371 = vmatpush.bf16.msra.mxu0 0
      %372 = vmatpush.bf16.msra.mxu0 0
      %373 = vmatpush.bf16.msra.mxu0 0
      %374 = vmatpush.bf16.msra.mxu0 0
      %375 = vmatpush.bf16.msra.mxu0 0
      %376 = vmatpush.bf16.msra.mxu0 0
      %377 = vmatpush.bf16.msra.mxu0 %v365
      %378 = vmatmul.bf16.gmra.mxu0 %v203
      %v379 = vpop.f32.mrf.mxu0
      %v380 = vadd.f32 %v181, %v379
      %v381 = vpop.f32.mrf.mxu0
      %v382 = vadd.f32 %v186, %v381
      %383 = vdwg.mxu0
      %384 = vmatpush.bf16.msra.mxu0 0
      %385 = vmatpush.bf16.msra.mxu0 0
      %386 = vmatpush.bf16.msra.mxu0 0
      %387 = vmatpush.bf16.msra.mxu0 0
      %388 = vmatpush.bf16.msra.mxu0 0
      %389 = vmatpush.bf16.msra.mxu0 0
      %390 = vmatpush.bf16.msra.mxu0 0
      %391 = vmatpush.bf16.msra.mxu0 %v368
      %392 = vmatmul.bf16.gmra.mxu0 %v203
      %v393 = vpop.f32.mrf.mxu0
      %v394 = vadd.f32 %v181, %v393
      %v395 = vpop.f32.mrf.mxu0
      %v396 = vadd.f32 %v186, %v395
      %397 = vdwg.mxu0
      %v398 = vmax.f32 %v380, 0.0
      %v399 = vmax.f32 %v394, 0.0
      %v400 = vmax.f32 %v382, 0.0
      %v401 = vmax.f32 %v396, 0.0
      %v402 = vmax.f32 %v349, %v398
      %v403 = vmax.f32 %v350, %v399
      %v404 = vmax.f32 %v351, %v400
      %v405 = vmax.f32 %v352, %v401
      %406 = vst [vmem:[%s170] sm:$0xff] %v402
      %vm407 = vcmask 334848
      %408 = vst.msk [vmem:[%s170 + $0x8] sm:$0xff] %vm407, %v403
      %409 = vst [vmem:[%s170 + $0x10] sm:$0xff] %v404
      %410 = vst.msk [vmem:[%s170 + $0x18] sm:$0xff] %vm407, %v405
      %p411 = scmp.lt.s32.totalorder %s14, 1
      %s412 = scalar_select %p411, %s14, 1
      %s413 = smul.addr %s412, 4
      %s414 = smul.addr %s413, 8
      %s415 = scalar_lea.vmem %s3, %s414
      // Predicated region
      $region33: #{classifier_forward.3} parent=31 // pred_check
        %p416 = pneg %p100
      $region34: #{classifier_forward.3} parent=31 // pred_check_branch
        %418 = sbr.rel (%p416) target = $region36
      $region35: #{classifier_forward.3} parent=31 // pred_region
        _
      $region36: #{classifier_forward.3} parent=31 // pred_fallthru
        _
    $region32: #{classifier_forward.3} parent=5 // pred_fallthru
      _
    %p419 = scmp.le.s32.totalorder 2, %s9
    // Predicated region
    $region37: #{classifier_forward.3} parent=5 // pred_check
      %p420 = pneg %p419
    $region38: #{classifier_forward.3} parent=5 // pred_check_branch
      %422 = sbr.rel (%p420) target = $region40
    $region39: #{classifier_forward.3} parent=5 // pred_region
      %s423 = ssub.s32 %s9, 2
      // Predicated region
      $region41: #{classifier_forward.3} parent=39 // pred_check
        %p424 = pneg %p106
      $region42: #{classifier_forward.3} parent=39 // pred_check_branch
        %426 = sbr.rel (%p424) target = $region44
      $region43: #{classifier_forward.3} parent=39 // pred_region
        %p427 = scmp.lt.s32.totalorder %s15, 1
        %s428 = scalar_select %p427, %s15, 1
        %s429 = smul.addr %s428, 4
        %s430 = smul.addr %s429, 8
        %s431 = scalar_lea.vmem %s3, %s430
      $region44: #{classifier_forward.3} parent=39 // pred_fallthru
        _
    $region40: #{classifier_forward.3} parent=5 // pred_fallthru
      _
  $region6: #{classifier_forward.3} parent=0 // loop_footer
    %s13 = sadd.s32 1, %s9
  $region7: #{classifier_forward.3} parent=0 // loop_footer_branch
    %8 = sbr.rel target = $region3
  $region8: #{classifier_forward.3} parent=0 // loop_exit
    _

// kernel: classifier_forward.4
$region0: #{classifier_forward.4}
  #allocation0 [shape = 'u32[]', space=smem, size = 0x4, offset = 0x4, fixed_abs, tag = 'smem constant byte address 0x4 - core index']
  #allocation1 [shape = 'u32[72,128]{1,0:T(1,128)}', space=vmem, size = 0x9000, scoped, tag = 'internal scratch']
  %s0 = inlined_call_operand.vmem [shape: bf16[2,4,144,25], index: 0, kind: input, shape index: {}]
  %s1 = inlined_call_operand.vmem [shape: bf16[32,144], index: 1, kind: input, shape index: {}]
  %s2 = inlined_call_operand.vmem [shape: f32[32,1], index: 2, kind: input, shape index: {}]
  %s3 = inlined_call_operand.vmem [shape: f32[2,32,25], index: 3, kind: output, shape index: {}]
  %s4 = sld [smem:[#allocation0]]
  $region45: #{classifier_forward.4} parent=0
    _
  %s6 = ssub.s32 1, %s4
  %s7 = scalar_select 0, %s6, %s4
  loop: start=0, step=1, limit=4
  $region2: #{classifier_forward.4} parent=0 // loop_pre_header
    _
  $region3: #{classifier_forward.4} parent=0 // loop_header
    %s9 = sphi 0, %s13
    %p10 = scmp.ge.s32.totalorder %s9, 4
    %s19 = sphi 0, %s21
    %s22 = sphi 0, %s19
    %s23 = sphi 0, %s22
    %s39 = sphi 0, %s23
    %s43 = sphi 0, %s43
    %s45 = sphi 0, %s43
    %s46 = sphi 0, %s45
    %s60 = sphi 0, %s46
    %s64 = sphi 0, %s64
    %s66 = sphi 0, %s64
    %s67 = sphi 0, %s66
    %s81 = sphi 0, %s67
    %s87 = sphi 0, %s89
    %s90 = sphi 0, %s87
    %s91 = sphi 0, %s90
    %s107 = sphi 0, %s91
  $region4: #{classifier_forward.4} parent=0 // loop_header_branch
    %12 = sbr.rel (%p10) target = $region8
  $region5: #{classifier_forward.4} parent=0 // loop_body
    %s14 = ssub.s32 %s9, 1
    %s15 = ssub.s32 %s9, 2
    %s16 = sadd.s32 %s9, 1
    %s17 = ssub.s32 %s9, %s16
    %p18 = scmp.eq.s32.totalorder %s17, 0
    %s20 = sadd.s32 %s19, 1
    %s21 = scalar_select %p18, %s19, %s20
    %p24 = pneg %p18
    %p25 = scmp.eq.s32.totalorder %s9, 1
    %p26 = por %p24, %p25
    %p27 = scmp.ne.s32.totalorder %s19, %s22
    %p28 = scmp.eq.s32.totalorder %s9, 0
    %p29 = por %p27, %p28
    %p30 = scmp.ne.s32.totalorder %s19, %s22
    %p31 = scmp.eq.s32.totalorder %s14, 1
    %p32 = por %p30, %p31
    %p33 = scmp.ne.s32.totalorder %s22, %s23
    %p34 = scmp.eq.s32.totalorder %s14, 0
    %p35 = por %p33, %p34
    %p36 = scmp.ne.s32.totalorder %s22, %s23
    %p37 = scmp.eq.s32.totalorder %s15, 1
    %p38 = por %p36, %p37
    %p40 = scmp.ne.s32.totalorder %s23, %s39
    %p41 = scmp.eq.s32.totalorder %s15, 0
    %p42 = por %p40, %p41
    %s44 = sadd.s32 %s43, 1
    %p47 = scmp.eq.s32.totalorder %s9, 1
    %p48 = scmp.ne.s32.totalorder %s43, %s45
    %p49 = scmp.eq.s32.totalorder %s9, 0
    %p50 = por %p48, %p49
    %p51 = scmp.ne.s32.totalorder %s43, %s45
    %p52 = scmp.eq.s32.totalorder %s14, 1
    %p53 = por %p51, %p52
    %p54 = scmp.ne.s32.totalorder %s45, %s46
    %p55 = scmp.eq.s32.totalorder %s14, 0
    %p56 = por %p54, %p55
    %p57 = scmp.ne.s32.totalorder %s45, %s46
    %p58 = scmp.eq.s32.totalorder %s15, 1
    %p59 = por %p57, %p58
    %p61 = scmp.ne.s32.totalorder %s46, %s60
    %p62 = scmp.eq.s32.totalorder %s15, 0
    %p63 = por %p61, %p62
    %s65 = sadd.s32 %s64, 1
    %p68 = scmp.eq.s32.totalorder %s9, 1
    %p69 = scmp.ne.s32.totalorder %s64, %s66
    %p70 = scmp.eq.s32.totalorder %s9, 0
    %p71 = por %p69, %p70
    %p72 = scmp.ne.s32.totalorder %s64, %s66
    %p73 = scmp.eq.s32.totalorder %s14, 1
    %p74 = por %p72, %p73
    %p75 = scmp.ne.s32.totalorder %s66, %s67
    %p76 = scmp.eq.s32.totalorder %s14, 0
    %p77 = por %p75, %p76
    %p78 = scmp.ne.s32.totalorder %s66, %s67
    %p79 = scmp.eq.s32.totalorder %s15, 1
    %p80 = por %p78, %p79
    %p82 = scmp.ne.s32.totalorder %s67, %s81
    %p83 = scmp.eq.s32.totalorder %s15, 0
    %p84 = por %p82, %p83
    %s85 = ssub.s32 %s9, %s16
    %p86 = scmp.eq.s32.totalorder %s85, 0
    %s88 = sadd.s32 %s87, 1
    %s89 = scalar_select %p86, %s87, %s88
    %p92 = pneg %p86
    %p93 = scmp.eq.s32.totalorder %s9, 1
    %p94 = por %p92, %p93
    %p95 = scmp.ne.s32.totalorder %s87, %s90
    %p96 = scmp.eq.s32.totalorder %s9, 0
    %p97 = por %p95, %p96
    %p98 = scmp.ne.s32.totalorder %s87, %s90
    %p99 = scmp.eq.s32.totalorder %s14, 1
    %p100 = por %p98, %p99
    %p101 = scmp.ne.s32.totalorder %s90, %s91
    %p102 = scmp.eq.s32.totalorder %s14, 0
    %p103 = por %p101, %p102
    %p104 = scmp.ne.s32.totalorder %s90, %s91
    %p105 = scmp.eq.s32.totalorder %s15, 1
    %p106 = por %p104, %p105
    %p108 = scmp.ne.s32.totalorder %s91, %s107
    %p109 = scmp.eq.s32.totalorder %s15, 0
    %p110 = por %p108, %p109
    %p111 = scmp.le.s32.totalorder 1, %s9
    %p112 = scmp.lt.s32.totalorder %s9, 3
    %p113 = pnand %p111, %p112
    %p114 = pneg %p113
    // Predicated region
    $region9: #{classifier_forward.4} parent=5 // pred_check
      _
    $region10: #{classifier_forward.4} parent=5 // pred_check_branch
      %116 = sbr.rel (%p113) target = $region12
    $region11: #{classifier_forward.4} parent=5 // pred_region
      %s117 = ssub.s32 %s9, 1
      // Predicated region
      $region13: #{classifier_forward.4} parent=11 // pred_check
        %p118 = pneg %p56
      $region14: #{classifier_forward.4} parent=11 // pred_check_branch
        %120 = sbr.rel (%p118) target = $region16
      $region15: #{classifier_forward.4} parent=11 // pred_region
        _
      $region16: #{classifier_forward.4} parent=11 // pred_fallthru
        _
      // Predicated region
      $region17: #{classifier_forward.4} parent=11 // pred_check
        %p121 = pneg %p77
      $region18: #{classifier_forward.4} parent=11 // pred_check_branch
        %123 = sbr.rel (%p121) target = $region20
      $region19: #{classifier_forward.4} parent=11 // pred_region
        _
      $region20: #{classifier_forward.4} parent=11 // pred_fallthru
        _
    $region12: #{classifier_forward.4} parent=5 // pred_fallthru
      _
    %p124 = scmp.lt.s32.totalorder %s9, 2
    // Predicated region
    $region21: #{classifier_forward.4} parent=5 // pred_check
      %p125 = pneg %p124
    $region22: #{classifier_forward.4} parent=5 // pred_check_branch
      %127 = sbr.rel (%p125) target = $region24
    $region23: #{classifier_forward.4} parent=5 // pred_region
      // Predicated region
      $region25: #{classifier_forward.4} parent=23 // pred_check
        %p128 = pneg %p29
      $region26: #{classifier_forward.4} parent=23 // pred_check_branch
        %130 = sbr.rel (%p128) target = $region28
      $region27: #{classifier_forward.4} parent=23 // pred_region
        %p131 = scmp.lt.s32.totalorder %s9, 1
        %s132 = scalar_select %p131, %s9, 1
        %s133 = smul.addr %s132, 72
        %s134 = smul.addr %s133, 4
        %s135 = scalar_lea.vmem %s0, %s134
      $region28: #{classifier_forward.4} parent=23 // pred_fallthru
        _
    $region24: #{classifier_forward.4} parent=5 // pred_fallthru
      _
    %p136 = scmp.le.s32.totalorder 1, %s9
    %p137 = scmp.lt.s32.totalorder %s9, 3
    %p138 = pnand %p136, %p137
    %p139 = pneg %p138
    // Predicated region
    $region29: #{classifier_forward.4} parent=5 // pred_check
      _
    $region30: #{classifier_forward.4} parent=5 // pred_check_branch
      %141 = sbr.rel (%p138) target = $region32
    $region31: #{classifier_forward.4} parent=5 // pred_region
      %s142 = ssub.s32 %s9, 1
      %p143 = scmp.lt.s32.totalorder %s14, 1
      %s144 = scalar_select %p143, %s14, 1
      %s145 = smul.addr %s144, 72
      %s146 = smul.addr %s145, 4
      %s147 = scalar_lea.vmem %s0, %s146
      %p148 = pneg %p35
      %p149 = pneg %p32
      %p150 = pneg %p56
      %p151 = pneg %p53
      %p152 = pneg %p77
      %p153 = pneg %p74
      %p154 = pneg %p103
      %p155 = pneg %p100
      %p156 = scmp.lt.s32.totalorder %s14, 1
      %s157 = scalar_select %p156, %s14, 1
      %s158 = smul.addr %s157, 4
      %s159 = smul.addr %s158, 8
      %s160 = scalar_lea.vmem %s3, %s159
      %p161 = scmp.lt.s32.totalorder %s14, 1
      %s162 = scalar_select %p161, %s14, 1
      %s163 = smul.addr %s162, 72
      %s164 = smul.addr %s163, 4
      %s165 = scalar_lea.vmem %s0, %s164
      %p166 = scmp.lt.s32.totalorder %s14, 1
      %s167 = scalar_select %p166, %s14, 1
      %s168 = smul.addr %s167, 4
      %s169 = smul.addr %s168, 8
      %s170 = scalar_lea.vmem %s3, %s169
      %v172 = vld [vmem:[%s1] sm:$0xff]
      %v173 = vld [vmem:[%s1 + $0x8] sm:$0xff]
      %v174 = vld [vmem:[%s1 + $0x10] sm:$0xff]
      %v175 = vld [vmem:[%s1 + $0x18] sm:$0xff]
      %v176 = vld [vmem:[%s2] sm:$0xff]
      %v177 = vld [vmem:[%s2 + $0x8] sm:$0xff]
      %v178 = vld [vmem:[%s2 + $0x10] sm:$0xff]
      %v179 = vld [vmem:[%s2 + $0x18] sm:$0xff]
      %v180 = vld [vmem:[%s165] sm:$0xf]
      %v181 = vld [vmem:[%s165 + $0x4] sm:$0xf]
      %v182 = vld [vmem:[%s165 + $0x8] sm:$0xf]
      %v183 = vld [vmem:[%s165 + $0xc] sm:$0xf]
      %v184 = vld [vmem:[%s165 + $0x10] sm:$0xf]
      %v185 = vld [vmem:[%s165 + $0x14] sm:$0xf]
      %v186 = vld [vmem:[%s165 + $0x18] sm:$0xf]
      %v187 = vld [vmem:[%s165 + $0x1c] sm:$0xf]
      %v188 = vld [vmem:[%s165 + $0x20] sm:$0xf]
      %v189 = vld [vmem:[%s165 + $0x24] sm:$0xf]
      %v190 = vld [vmem:[%s165 + $0x28] sm:$0xf]
      %v191 = vld [vmem:[%s165 + $0x2c] sm:$0xf]
      %v192 = vld [vmem:[%s165 + $0x30] sm:$0xf]
      %v193 = vld [vmem:[%s165 + $0x34] sm:$0xf]
      %v194 = vld [vmem:[%s165 + $0x38] sm:$0xf]
      %v195 = vld [vmem:[%s165 + $0x3c] sm:$0xf]
      %v196 = vld [vmem:[%s165 + $0x40] sm:$0xf]
      %v197 = vld [vmem:[%s165 + $0x44] sm:$0xf]
      %199 = vset.pattern.permute.xlu0 0
      %200 = vperm.xlu0 %199, %v176
      %v201 = vpop.permute.xlu0 %200
      %204 = vset.pattern.permute.xlu0 0
      %205 = vperm.xlu0 %204, %v177
      %v206 = vpop.permute.xlu0 %205
      %209 = vset.pattern.permute.xlu0 0
      %210 = vperm.xlu0 %209, %v178
      %v211 = vpop.permute.xlu0 %210
      %214 = vset.pattern.permute.xlu0 0
      %215 = vperm.xlu0 %214, %v179
      %v216 = vpop.permute.xlu0 %215
      %v222 = vunpack.c.l.b16 %v172
      %v223 = vunpack.c.h.b16 %v172
      %v224 = vunpack.c.l.b16 %v173
      %v225 = vunpack.c.h.b16 %v173
      %v226 = vunpack.c.l.b16 %v174
      %v227 = vunpack.c.h.b16 %v174
      %v228 = vunpack.c.l.b16 %v175
      %v229 = vunpack.c.h.b16 %v175
      %v230 = vpack.c.b16 %v224, %v222
      %v231 = vpack.c.b16 %v225, %v223
      %v232 = vpack.c.b16 %v228, %v226
      %v233 = vpack.c.b16 %v229, %v227
      %v254 = vunpack.c.l.b16 %v180
      %v255 = vunpack.c.l.b16 %v181
      %v256 = vunpack.c.l.b16 %v182
      %v257 = vunpack.c.l.b16 %v183
      %v258 = vunpack.c.l.b16 %v184
      %v259 = vunpack.c.l.b16 %v185
      %v260 = vunpack.c.l.b16 %v186
      %v261 = vunpack.c.l.b16 %v187
      %v262 = vunpack.c.l.b16 %v188
      %v263 = vunpack.c.l.b16 %v189
      %v264 = vunpack.c.l.b16 %v190
      %v265 = vunpack.c.l.b16 %v191
      %v266 = vunpack.c.l.b16 %v192
      %v267 = vunpack.c.l.b16 %v193
      %v268 = vunpack.c.l.b16 %v194
      %v269 = vunpack.c.l.b16 %v195
      %v270 = vunpack.c.l.b16 %v196
      %v271 = vunpack.c.l.b16 %v197
      %v272 = vpack.c.b16 %v255, %v254
      %v273 = vpack.c.b16 %v257, %v256
      %v274 = vpack.c.b16 %v259, %v258
      %v275 = vpack.c.b16 %v261, %v260
      %v276 = vpack.c.b16 %v263, %v262
      %v277 = vpack.c.b16 %v265, %v264
      %v278 = vpack.c.b16 %v267, %v266
      %v279 = vpack.c.b16 %v269, %v268
      %v280 = vpack.c.b16 %v271, %v270
      %vm290 = vcmask 130048
      %v292 = vsel %vm290, %v231, 0
      %v295 = vsel %vm290, %v233, 0
      %297 = vmatpush.bf16.msra.mxu0 %v279
      %298 = vmatpush.bf16.msra.mxu0 %v278
      %299 = vmatpush.bf16.msra.mxu0 %v277
      %300 = vmatpush.bf16.msra.mxu0 %v276
      %301 = vmatpush.bf16.msra.mxu0 %v275
      %302 = vmatpush.bf16.msra.mxu0 %v274
      %303 = vmatpush.bf16.msra.mxu0 %v273
      %304 = vmatpush.bf16.msra.mxu0 %v272
      %305 = vmatmul.bf16.gmra.mxu0 %v230
      %v306 = vpop.f32.mrf.mxu0
      %v307 = vadd.f32 %v201, %v306
      %v308 = vpop.f32.mrf.mxu0
      %v309 = vadd.f32 %v206, %v308
      %310 = vmatmul.bf16.gmra.mxu0 %v232
      %v311 = vpop.f32.mrf.mxu0
      %v312 = vadd.f32 %v211, %v311
      %v313 = vpop.f32.mrf.mxu0
      %v314 = vadd.f32 %v216, %v313
      %315 = vdwg.mxu0
      %316 = vmatpush.bf16.msra.mxu0 0
      %317 = vmatpush.bf16.msra.mxu0 0
      %318 = vmatpush.bf16.msra.mxu0 0
      %319 = vmatpush.bf16.msra.mxu0 0
      %320 = vmatpush.bf16.msra.mxu0 0
      %321 = vmatpush.bf16.msra.mxu0 0
      %322 = vmatpush.bf16.msra.mxu0 0
      %323 = vmatpush.bf16.msra.mxu0 %v280
      %324 = vmatmul.bf16.gmra.mxu0 %v292
      %v325 = vpop.f32.mrf.mxu0
      %v326 = vadd.f32 %v307, %v325
      %v327 = vpop.f32.mrf.mxu0
      %v328 = vadd.f32 %v309, %v327
      %329 = vmatmul.bf16.gmra.mxu0 %v295
      %v330 = vpop.f32.mrf.mxu0
      %v331 = vadd.f32 %v312, %v330
      %v332 = vpop.f32.mrf.mxu0
      %v333 = vadd.f32 %v314, %v332
      %334 = vdwg.mxu0
      %v335 = vmax.f32 %v326, 0.0
      %v336 = vmax.f32 %v328, 0.0
      %v337 = vmax.f32 %v331, 0.0
      %v338 = vmax.f32 %v333, 0.0
      %s339 = scalar_lea.vmem %s165, 72
      %v340 = vld [vmem:[%s339] sm:$0xf]
      %v341 = vld [vmem:[%s339 + $0x4] sm:$0xf]
      %v342 = vld [vmem:[%s339 + $0x8] sm:$0xf]
      %v343 = vld [vmem:[%s339 + $0xc] sm:$0xf]
      %v344 = vld [vmem:[%s339 + $0x10] sm:$0xf]
      %v345 = vld [vmem:[%s339 + $0x14] sm:$0xf]
      %v346 = vld [vmem:[%s339 + $0x18] sm:$0xf]
      %v347 = vld [vmem:[%s339 + $0x1c] sm:$0xf]
      %v348 = vld [vmem:[%s339 + $0x20] sm:$0xf]
      %v349 = vld [vmem:[%s339 + $0x24] sm:$0xf]
      %v350 = vld [vmem:[%s339 + $0x28] sm:$0xf]
      %v351 = vld [vmem:[%s339 + $0x2c] sm:$0xf]
      %v352 = vld [vmem:[%s339 + $0x30] sm:$0xf]
      %v353 = vld [vmem:[%s339 + $0x34] sm:$0xf]
      %v354 = vld [vmem:[%s339 + $0x38] sm:$0xf]
      %v355 = vld [vmem:[%s339 + $0x3c] sm:$0xf]
      %v356 = vld [vmem:[%s339 + $0x40] sm:$0xf]
      %v357 = vld [vmem:[%s339 + $0x44] sm:$0xf]
      %v376 = vunpack.c.l.b16 %v340
      %v377 = vunpack.c.l.b16 %v341
      %v378 = vunpack.c.l.b16 %v342
      %v379 = vunpack.c.l.b16 %v343
      %v380 = vunpack.c.l.b16 %v344
      %v381 = vunpack.c.l.b16 %v345
      %v382 = vunpack.c.l.b16 %v346
      %v383 = vunpack.c.l.b16 %v347
      %v384 = vunpack.c.l.b16 %v348
      %v385 = vunpack.c.l.b16 %v349
      %v386 = vunpack.c.l.b16 %v350
      %v387 = vunpack.c.l.b16 %v351
      %v388 = vunpack.c.l.b16 %v352
      %v389 = vunpack.c.l.b16 %v353
      %v390 = vunpack.c.l.b16 %v354
      %v391 = vunpack.c.l.b16 %v355
      %v392 = vunpack.c.l.b16 %v356
      %v393 = vunpack.c.l.b16 %v357
      %v394 = vpack.c.b16 %v377, %v376
      %v395 = vpack.c.b16 %v379, %v378
      %v396 = vpack.c.b16 %v381, %v380
      %v397 = vpack.c.b16 %v383, %v382
      %v398 = vpack.c.b16 %v385, %v384
      %v399 = vpack.c.b16 %v387, %v386
      %v400 = vpack.c.b16 %v389, %v388
      %v401 = vpack.c.b16 %v391, %v390
      %v402 = vpack.c.b16 %v393, %v392
      %412 = vmatpush.bf16.msra.mxu0 %v401
      %413 = vmatpush.bf16.msra.mxu0 %v400
      %414 = vmatpush.bf16.msra.mxu0 %v399
      %415 = vmatpush.bf16.msra.mxu0 %v398
      %416 = vmatpush.bf16.msra.mxu0 %v397
      %417 = vmatpush.bf16.msra.mxu0 %v396
      %418 = vmatpush.bf16.msra.mxu0 %v395
      %419 = vmatpush.bf16.msra.mxu0 %v394
      %420 = vmatmul.bf16.gmra.mxu0 %v230
      %v421 = vpop.f32.mrf.mxu0
      %v422 = vadd.f32 %v201, %v421
      %v423 = vpop.f32.mrf.mxu0
      %v424 = vadd.f32 %v206, %v423
      %425 = vmatmul.bf16.gmra.mxu0 %v232
      %v426 = vpop.f32.mrf.mxu0
      %v427 = vadd.f32 %v211, %v426
      %v428 = vpop.f32.mrf.mxu0
      %v429 = vadd.f32 %v216, %v428
      %430 = vdwg.mxu0
      %431 = vmatpush.bf16.msra.mxu0 0
      %432 = vmatpush.bf16.msra.mxu0 0
      %433 = vmatpush.bf16.msra.mxu0 0
      %434 = vmatpush.bf16.msra.mxu0 0
      %435 = vmatpush.bf16.msra.mxu0 0
      %436 = vmatpush.bf16.msra.mxu0 0
      %437 = vmatpush.bf16.msra.mxu0 0
      %438 = vmatpush.bf16.msra.mxu0 %v402
      %439 = vmatmul.bf16.gmra.mxu0 %v292
      %v440 = vpop.f32.mrf.mxu0
      %v441 = vadd.f32 %v422, %v440
      %v442 = vpop.f32.mrf.mxu0
      %v443 = vadd.f32 %v424, %v442
      %444 = vmatmul.bf16.gmra.mxu0 %v295
      %v445 = vpop.f32.mrf.mxu0
      %v446 = vadd.f32 %v427, %v445
      %v447 = vpop.f32.mrf.mxu0
      %v448 = vadd.f32 %v429, %v447
      %449 = vdwg.mxu0
      %v450 = vmax.f32 %v441, 0.0
      %v451 = vmax.f32 %v443, 0.0
      %v452 = vmax.f32 %v446, 0.0
      %v453 = vmax.f32 %v448, 0.0
      %v454 = vmax.f32 %v335, %v450
      %v455 = vmax.f32 %v336, %v451
      %v456 = vmax.f32 %v337, %v452
      %v457 = vmax.f32 %v338, %v453
      %s458 = scalar_lea.vmem %s165, 144
      %v459 = vld [vmem:[%s458] sm:$0xf]
      %v460 = vld [vmem:[%s458 + $0x4] sm:$0xf]
      %v461 = vld [vmem:[%s458 + $0x8] sm:$0xf]
      %v462 = vld [vmem:[%s458 + $0xc] sm:$0xf]
      %v463 = vld [vmem:[%s458 + $0x10] sm:$0xf]
      %v464 = vld [vmem:[%s458 + $0x14] sm:$0xf]
      %v465 = vld [vmem:[%s458 + $0x18] sm:$0xf]
      %v466 = vld [vmem:[%s458 + $0x1c] sm:$0xf]
      %v467 = vld [vmem:[%s458 + $0x20] sm:$0xf]
      %v468 = vld [vmem:[%s458 + $0x24] sm:$0xf]
      %v469 = vld [vmem:[%s458 + $0x28] sm:$0xf]
      %v470 = vld [vmem:[%s458 + $0x2c] sm:$0xf]
      %v471 = vld [vmem:[%s458 + $0x30] sm:$0xf]
      %v472 = vld [vmem:[%s458 + $0x34] sm:$0xf]
      %v473 = vld [vmem:[%s458 + $0x38] sm:$0xf]
      %v474 = vld [vmem:[%s458 + $0x3c] sm:$0xf]
      %v475 = vld [vmem:[%s458 + $0x40] sm:$0xf]
      %v476 = vld [vmem:[%s458 + $0x44] sm:$0xf]
      %v495 = vunpack.c.l.b16 %v459
      %v496 = vunpack.c.l.b16 %v460
      %v497 = vunpack.c.l.b16 %v461
      %v498 = vunpack.c.l.b16 %v462
      %v499 = vunpack.c.l.b16 %v463
      %v500 = vunpack.c.l.b16 %v464
      %v501 = vunpack.c.l.b16 %v465
      %v502 = vunpack.c.l.b16 %v466
      %v503 = vunpack.c.l.b16 %v467
      %v504 = vunpack.c.l.b16 %v468
      %v505 = vunpack.c.l.b16 %v469
      %v506 = vunpack.c.l.b16 %v470
      %v507 = vunpack.c.l.b16 %v471
      %v508 = vunpack.c.l.b16 %v472
      %v509 = vunpack.c.l.b16 %v473
      %v510 = vunpack.c.l.b16 %v474
      %v511 = vunpack.c.l.b16 %v475
      %v512 = vunpack.c.l.b16 %v476
      %v513 = vpack.c.b16 %v496, %v495
      %v514 = vpack.c.b16 %v498, %v497
      %v515 = vpack.c.b16 %v500, %v499
      %v516 = vpack.c.b16 %v502, %v501
      %v517 = vpack.c.b16 %v504, %v503
      %v518 = vpack.c.b16 %v506, %v505
      %v519 = vpack.c.b16 %v508, %v507
      %v520 = vpack.c.b16 %v510, %v509
      %v521 = vpack.c.b16 %v512, %v511
      %531 = vmatpush.bf16.msra.mxu0 %v520
      %532 = vmatpush.bf16.msra.mxu0 %v519
      %533 = vmatpush.bf16.msra.mxu0 %v518
      %534 = vmatpush.bf16.msra.mxu0 %v517
      %535 = vmatpush.bf16.msra.mxu0 %v516
      %536 = vmatpush.bf16.msra.mxu0 %v515
      %537 = vmatpush.bf16.msra.mxu0 %v514
      %538 = vmatpush.bf16.msra.mxu0 %v513
      %539 = vmatmul.bf16.gmra.mxu0 %v230
      %v540 = vpop.f32.mrf.mxu0
      %v541 = vadd.f32 %v201, %v540
      %v542 = vpop.f32.mrf.mxu0
      %v543 = vadd.f32 %v206, %v542
      %544 = vmatmul.bf16.gmra.mxu0 %v232
      %v545 = vpop.f32.mrf.mxu0
      %v546 = vadd.f32 %v211, %v545
      %v547 = vpop.f32.mrf.mxu0
      %v548 = vadd.f32 %v216, %v547
      %549 = vdwg.mxu0
      %550 = vmatpush.bf16.msra.mxu0 0
      %551 = vmatpush.bf16.msra.mxu0 0
      %552 = vmatpush.bf16.msra.mxu0 0
      %553 = vmatpush.bf16.msra.mxu0 0
      %554 = vmatpush.bf16.msra.mxu0 0
      %555 = vmatpush.bf16.msra.mxu0 0
      %556 = vmatpush.bf16.msra.mxu0 0
      %557 = vmatpush.bf16.msra.mxu0 %v521
      %558 = vmatmul.bf16.gmra.mxu0 %v292
      %v559 = vpop.f32.mrf.mxu0
      %v560 = vadd.f32 %v541, %v559
      %v561 = vpop.f32.mrf.mxu0
      %v562 = vadd.f32 %v543, %v561
      %563 = vmatmul.bf16.gmra.mxu0 %v295
      %v564 = vpop.f32.mrf.mxu0
      %v565 = vadd.f32 %v546, %v564
      %v566 = vpop.f32.mrf.mxu0
      %v567 = vadd.f32 %v548, %v566
      %568 = vdwg.mxu0
      %v569 = vmax.f32 %v560, 0.0
      %v570 = vmax.f32 %v562, 0.0
      %v571 = vmax.f32 %v565, 0.0
      %v572 = vmax.f32 %v567, 0.0
      %v573 = vmax.f32 %v454, %v569
      %v574 = vmax.f32 %v455, %v570
      %v575 = vmax.f32 %v456, %v571
      %v576 = vmax.f32 %v457, %v572
      %s577 = scalar_lea.vmem %s165, 216
      %v578 = vld [vmem:[%s577] sm:$0xf]
      %v579 = vld [vmem:[%s577 + $0x4] sm:$0xf]
      %v580 = vld [vmem:[%s577 + $0x8] sm:$0xf]
      %v581 = vld [vmem:[%s577 + $0xc] sm:$0xf]
      %v582 = vld [vmem:[%s577 + $0x10] sm:$0xf]
      %v583 = vld [vmem:[%s577 + $0x14] sm:$0xf]
      %v584 = vld [vmem:[%s577 + $0x18] sm:$0xf]
      %v585 = vld [vmem:[%s577 + $0x1c] sm:$0xf]
      %v586 = vld [vmem:[%s577 + $0x20] sm:$0xf]
      %v587 = vld [vmem:[%s577 + $0x24] sm:$0xf]
      %v588 = vld [vmem:[%s577 + $0x28] sm:$0xf]
      %v589 = vld [vmem:[%s577 + $0x2c] sm:$0xf]
      %v590 = vld [vmem:[%s577 + $0x30] sm:$0xf]
      %v591 = vld [vmem:[%s577 + $0x34] sm:$0xf]
      %v592 = vld [vmem:[%s577 + $0x38] sm:$0xf]
      %v593 = vld [vmem:[%s577 + $0x3c] sm:$0xf]
      %v594 = vld [vmem:[%s577 + $0x40] sm:$0xf]
      %v595 = vld [vmem:[%s577 + $0x44] sm:$0xf]
      %v614 = vunpack.c.l.b16 %v578
      %v615 = vunpack.c.l.b16 %v579
      %v616 = vunpack.c.l.b16 %v580
      %v617 = vunpack.c.l.b16 %v581
      %v618 = vunpack.c.l.b16 %v582
      %v619 = vunpack.c.l.b16 %v583
      %v620 = vunpack.c.l.b16 %v584
      %v621 = vunpack.c.l.b16 %v585
      %v622 = vunpack.c.l.b16 %v586
      %v623 = vunpack.c.l.b16 %v587
      %v624 = vunpack.c.l.b16 %v588
      %v625 = vunpack.c.l.b16 %v589
      %v626 = vunpack.c.l.b16 %v590
      %v627 = vunpack.c.l.b16 %v591
      %v628 = vunpack.c.l.b16 %v592
      %v629 = vunpack.c.l.b16 %v593
      %v630 = vunpack.c.l.b16 %v594
      %v631 = vunpack.c.l.b16 %v595
      %v632 = vpack.c.b16 %v615, %v614
      %v633 = vpack.c.b16 %v617, %v616
      %v634 = vpack.c.b16 %v619, %v618
      %v635 = vpack.c.b16 %v621, %v620
      %v636 = vpack.c.b16 %v623, %v622
      %v637 = vpack.c.b16 %v625, %v624
      %v638 = vpack.c.b16 %v627, %v626
      %v639 = vpack.c.b16 %v629, %v628
      %v640 = vpack.c.b16 %v631, %v630
      %650 = vmatpush.bf16.msra.mxu0 %v639
      %651 = vmatpush.bf16.msra.mxu0 %v638
      %652 = vmatpush.bf16.msra.mxu0 %v637
      %653 = vmatpush.bf16.msra.mxu0 %v636
      %654 = vmatpush.bf16.msra.mxu0 %v635
      %655 = vmatpush.bf16.msra.mxu0 %v634
      %656 = vmatpush.bf16.msra.mxu0 %v633
      %657 = vmatpush.bf16.msra.mxu0 %v632
      %658 = vmatmul.bf16.gmra.mxu0 %v230
      %v659 = vpop.f32.mrf.mxu0
      %v660 = vadd.f32 %v201, %v659
      %v661 = vpop.f32.mrf.mxu0
      %v662 = vadd.f32 %v206, %v661
      %663 = vmatmul.bf16.gmra.mxu0 %v232
      %v664 = vpop.f32.mrf.mxu0
      %v665 = vadd.f32 %v211, %v664
      %v666 = vpop.f32.mrf.mxu0
      %v667 = vadd.f32 %v216, %v666
      %668 = vdwg.mxu0
      %669 = vmatpush.bf16.msra.mxu0 0
      %670 = vmatpush.bf16.msra.mxu0 0
      %671 = vmatpush.bf16.msra.mxu0 0
      %672 = vmatpush.bf16.msra.mxu0 0
      %673 = vmatpush.bf16.msra.mxu0 0
      %674 = vmatpush.bf16.msra.mxu0 0
      %675 = vmatpush.bf16.msra.mxu0 0
      %676 = vmatpush.bf16.msra.mxu0 %v640
      %677 = vmatmul.bf16.gmra.mxu0 %v292
      %v678 = vpop.f32.mrf.mxu0
      %v679 = vadd.f32 %v660, %v678
      %v680 = vpop.f32.mrf.mxu0
      %v681 = vadd.f32 %v662, %v680
      %682 = vmatmul.bf16.gmra.mxu0 %v295
      %v683 = vpop.f32.mrf.mxu0
      %v684 = vadd.f32 %v665, %v683
      %v685 = vpop.f32.mrf.mxu0
      %v686 = vadd.f32 %v667, %v685
      %687 = vdwg.mxu0
      %v688 = vmax.f32 %v679, 0.0
      %v689 = vmax.f32 %v681, 0.0
      %v690 = vmax.f32 %v684, 0.0
      %v691 = vmax.f32 %v686, 0.0
      %v692 = vmax.f32 %v573, %v688
      %v693 = vmax.f32 %v574, %v689
      %v694 = vmax.f32 %v575, %v690
      %v695 = vmax.f32 %v576, %v691
      %vm696 = vcmask 203776
      %697 = vst.msk [vmem:[%s170] sm:$0xff] %vm696, %v692
      %698 = vst.msk [vmem:[%s170 + $0x8] sm:$0xff] %vm696, %v693
      %699 = vst.msk [vmem:[%s170 + $0x10] sm:$0xff] %vm696, %v694
      %700 = vst.msk [vmem:[%s170 + $0x18] sm:$0xff] %vm696, %v695
      %p701 = scmp.lt.s32.totalorder %s14, 1
      %s702 = scalar_select %p701, %s14, 1
      %s703 = smul.addr %s702, 4
      %s704 = smul.addr %s703, 8
      %s705 = scalar_lea.vmem %s3, %s704
      // Predicated region
      $region33: #{classifier_forward.4} parent=31 // pred_check
        %p706 = pneg %p100
      $region34: #{classifier_forward.4} parent=31 // pred_check_branch
        %708 = sbr.rel (%p706) target = $region36
      $region35: #{classifier_forward.4} parent=31 // pred_region
        _
      $region36: #{classifier_forward.4} parent=31 // pred_fallthru
        _
    $region32: #{classifier_forward.4} parent=5 // pred_fallthru
      _
    %p709 = scmp.le.s32.totalorder 2, %s9
    // Predicated region
    $region37: #{classifier_forward.4} parent=5 // pred_check
      %p710 = pneg %p709
    $region38: #{classifier_forward.4} parent=5 // pred_check_branch
      %712 = sbr.rel (%p710) target = $region40
    $region39: #{classifier_forward.4} parent=5 // pred_region
      %s713 = ssub.s32 %s9, 2
      // Predicated region
      $region41: #{classifier_forward.4} parent=39 // pred_check
        %p714 = pneg %p106
      $region42: #{classifier_forward.4} parent=39 // pred_check_branch
        %716 = sbr.rel (%p714) target = $region44
      $region43: #{classifier_forward.4} parent=39 // pred_region
        %p717 = scmp.lt.s32.totalorder %s15, 1
        %s718 = scalar_select %p717, %s15, 1
        %s719 = smul.addr %s718, 4
        %s720 = smul.addr %s719, 8
        %s721 = scalar_lea.vmem %s3, %s720
      $region44: #{classifier_forward.4} parent=39 // pred_fallthru
        _
    $region40: #{classifier_forward.4} parent=5 // pred_fallthru
      _
  $region6: #{classifier_forward.4} parent=0 // loop_footer
    %s13 = sadd.s32 1, %s9
  $region7: #{classifier_forward.4} parent=0 // loop_footer_branch
    %8 = sbr.rel target = $region3
  $region8: #{classifier_forward.4} parent=0 // loop_exit
    _

// kernel: classifier_forward.5
$region0: #{classifier_forward.5}
  #allocation0 [shape = 'u32[]', space=smem, size = 0x4, offset = 0x4, fixed_abs, tag = 'smem constant byte address 0x4 - core index']
  #allocation1 [shape = 'u32[72,128]{1,0:T(1,128)}', space=vmem, size = 0x9000, scoped, tag = 'internal scratch']
  %s0 = inlined_call_operand.vmem [shape: bf16[2,1,800], index: 0, kind: input, shape index: {}]
  %s1 = inlined_call_operand.vmem [shape: bf16[800,400], index: 1, kind: input, shape index: {}]
  %s2 = inlined_call_operand.vmem [shape: f32[1,400], index: 2, kind: input, shape index: {}]
  %s3 = inlined_call_operand.vmem [shape: bf16[400,10], index: 3, kind: input, shape index: {}]
  %s4 = inlined_call_operand.vmem [shape: f32[1,10], index: 4, kind: input, shape index: {}]
  %s5 = inlined_call_operand.hbm [shape: f32[2,1,10], index: 5, kind: output, shape index: {}]
  %s6 = sld [smem:[#allocation0]]
  $region53: #{classifier_forward.5} parent=0
    _
  %s8 = ssub.s32 1, %s6
  %s9 = scalar_select 0, %s8, %s6
  $region1: #{classifier_forward.5} parent=0
    #allocation2 [shape = 'u8[1024]{0}', space=vmem, size = 0x400, scoped, tag = 'output window, operand 0']
    #allocation3 [shape = 's32[2]{0}', space=sflag, size = 0x8, scoped, tag = 'scoped memory for classifier_forward.5']
    %10 = vsyncpa [#allocation3], 0
    %s11 = scalar_lea.sflag [#allocation3], 1
    %12 = vsyncpa %s11, 0
    loop: start=0, step=1, limit=4
    $region2: #{classifier_forward.5} parent=1 // loop_pre_header
      _
    $region3: #{classifier_forward.5} parent=1 // loop_header
      %s14 = sphi 0, %s18
      %p15 = scmp.ge.s32.totalorder %s14, 4
      %s24 = sphi 0, %s26
      %s27 = sphi 0, %s24
      %s28 = sphi 0, %s27
      %s44 = sphi 0, %s28
      %s48 = sphi 0, %s48
      %s50 = sphi 0, %s48
      %s51 = sphi 0, %s50
      %s65 = sphi 0, %s51
      %s69 = sphi 0, %s69
      %s71 = sphi 0, %s69
      %s72 = sphi 0, %s71
      %s86 = sphi 0, %s72
      %s90 = sphi 0, %s90
      %s92 = sphi 0, %s90
      %s93 = sphi 0, %s92
      %s107 = sphi 0, %s93
      %s111 = sphi 0, %s111
      %s113 = sphi 0, %s111
      %s114 = sphi 0, %s113
      %s128 = sphi 0, %s114
      %s134 = sphi 0, %s136
      %s137 = sphi 0, %s134
      %s138 = sphi 0, %s137
      %s154 = sphi 0, %s138
    $region4: #{classifier_forward.5} parent=1 // loop_header_branch
      %17 = sbr.rel (%p15) target = $region8
    $region5: #{classifier_forward.5} parent=1 // loop_body
      %s19 = ssub.s32 %s14, 1
      %s20 = ssub.s32 %s14, 2
      %s21 = sadd.s32 %s14, 1
      %s22 = ssub.s32 %s14, %s21
      %p23 = scmp.eq.s32.totalorder %s22, 0
      %s25 = sadd.s32 %s24, 1
      %s26 = scalar_select %p23, %s24, %s25
      %p29 = pneg %p23
      %p30 = scmp.eq.s32.totalorder %s14, 1
      %p31 = por %p29, %p30
      %p32 = scmp.ne.s32.totalorder %s24, %s27
      %p33 = scmp.eq.s32.totalorder %s14, 0
      %p34 = por %p32, %p33
      %p35 = scmp.ne.s32.totalorder %s24, %s27
      %p36 = scmp.eq.s32.totalorder %s19, 1
      %p37 = por %p35, %p36
      %p38 = scmp.ne.s32.totalorder %s27, %s28
      %p39 = scmp.eq.s32.totalorder %s19, 0
      %p40 = por %p38, %p39
      %p41 = scmp.ne.s32.totalorder %s27, %s28
      %p42 = scmp.eq.s32.totalorder %s20, 1
      %p43 = por %p41, %p42
      %p45 = scmp.ne.s32.totalorder %s28, %s44
      %p46 = scmp.eq.s32.totalorder %s20, 0
      %p47 = por %p45, %p46
      %s49 = sadd.s32 %s48, 1
      %p52 = scmp.eq.s32.totalorder %s14, 1
      %p53 = scmp.ne.s32.totalorder %s48, %s50
      %p54 = scmp.eq.s32.totalorder %s14, 0
      %p55 = por %p53, %p54
      %p56 = scmp.ne.s32.totalorder %s48, %s50
      %p57 = scmp.eq.s32.totalorder %s19, 1
      %p58 = por %p56, %p57
      %p59 = scmp.ne.s32.totalorder %s50, %s51
      %p60 = scmp.eq.s32.totalorder %s19, 0
      %p61 = por %p59, %p60
      %p62 = scmp.ne.s32.totalorder %s50, %s51
      %p63 = scmp.eq.s32.totalorder %s20, 1
      %p64 = por %p62, %p63
      %p66 = scmp.ne.s32.totalorder %s51, %s65
      %p67 = scmp.eq.s32.totalorder %s20, 0
      %p68 = por %p66, %p67
      %s70 = sadd.s32 %s69, 1
      %p73 = scmp.eq.s32.totalorder %s14, 1
      %p74 = scmp.ne.s32.totalorder %s69, %s71
      %p75 = scmp.eq.s32.totalorder %s14, 0
      %p76 = por %p74, %p75
      %p77 = scmp.ne.s32.totalorder %s69, %s71
      %p78 = scmp.eq.s32.totalorder %s19, 1
      %p79 = por %p77, %p78
      %p80 = scmp.ne.s32.totalorder %s71, %s72
      %p81 = scmp.eq.s32.totalorder %s19, 0
      %p82 = por %p80, %p81
      %p83 = scmp.ne.s32.totalorder %s71, %s72
      %p84 = scmp.eq.s32.totalorder %s20, 1
      %p85 = por %p83, %p84
      %p87 = scmp.ne.s32.totalorder %s72, %s86
      %p88 = scmp.eq.s32.totalorder %s20, 0
      %p89 = por %p87, %p88
      %s91 = sadd.s32 %s90, 1
      %p94 = scmp.eq.s32.totalorder %s14, 1
      %p95 = scmp.ne.s32.totalorder %s90, %s92
      %p96 = scmp.eq.s32.totalorder %s14, 0
      %p97 = por %p95, %p96
      %p98 = scmp.ne.s32.totalorder %s90, %s92
      %p99 = scmp.eq.s32.totalorder %s19, 1
      %p100 = por %p98, %p99
      %p101 = scmp.ne.s32.totalorder %s92, %s93
      %p102 = scmp.eq.s32.totalorder %s19, 0
      %p103 = por %p101, %p102
      %p104 = scmp.ne.s32.totalorder %s92, %s93
      %p105 = scmp.eq.s32.totalorder %s20, 1
      %p106 = por %p104, %p105
      %p108 = scmp.ne.s32.totalorder %s93, %s107
      %p109 = scmp.eq.s32.totalorder %s20, 0
      %p110 = por %p108, %p109
      %s112 = sadd.s32 %s111, 1
      %p115 = scmp.eq.s32.totalorder %s14, 1
      %p116 = scmp.ne.s32.totalorder %s111, %s113
      %p117 = scmp.eq.s32.totalorder %s14, 0
      %p118 = por %p116, %p117
      %p119 = scmp.ne.s32.totalorder %s111, %s113
      %p120 = scmp.eq.s32.totalorder %s19, 1
      %p121 = por %p119, %p120
      %p122 = scmp.ne.s32.totalorder %s113, %s114
      %p123 = scmp.eq.s32.totalorder %s19, 0
      %p124 = por %p122, %p123
      %p125 = scmp.ne.s32.totalorder %s113, %s114
      %p126 = scmp.eq.s32.totalorder %s20, 1
      %p127 = por %p125, %p126
      %p129 = scmp.ne.s32.totalorder %s114, %s128
      %p130 = scmp.eq.s32.totalorder %s20, 0
      %p131 = por %p129, %p130
      %s132 = ssub.s32 %s14, %s21
      %p133 = scmp.eq.s32.totalorder %s132, 0
      %s135 = sadd.s32 %s134, 1
      %s136 = scalar_select %p133, %s134, %s135
      %p139 = pneg %p133
      %p140 = scmp.eq.s32.totalorder %s14, 1
      %p141 = por %p139, %p140
      %p142 = scmp.ne.s32.totalorder %s134, %s137
      %p143 = scmp.eq.s32.totalorder %s14, 0
      %p144 = por %p142, %p143
      %p145 = scmp.ne.s32.totalorder %s134, %s137
      %p146 = scmp.eq.s32.totalorder %s19, 1
      %p147 = por %p145, %p146
      %p148 = scmp.ne.s32.totalorder %s137, %s138
      %p149 = scmp.eq.s32.totalorder %s19, 0
      %p150 = por %p148, %p149
      %p151 = scmp.ne.s32.totalorder %s137, %s138
      %p152 = scmp.eq.s32.totalorder %s20, 1
      %p153 = por %p151, %p152
      %p155 = scmp.ne.s32.totalorder %s138, %s154
      %p156 = scmp.eq.s32.totalorder %s20, 0
      %p157 = por %p155, %p156
      %p158 = scmp.le.s32.totalorder 1, %s14
      %p159 = scmp.lt.s32.totalorder %s14, 3
      %p160 = pnand %p158, %p159
      %p161 = pneg %p160
      // Predicated region
      $region9: #{classifier_forward.5} parent=5 // pred_check
        _
      $region10: #{classifier_forward.5} parent=5 // pred_check_branch
        %163 = sbr.rel (%p160) target = $region12
      $region11: #{classifier_forward.5} parent=5 // pred_region
        %s164 = ssub.s32 %s14, 1
        // Predicated region
        $region13: #{classifier_forward.5} parent=11 // pred_check
          %p165 = pneg %p61
        $region14: #{classifier_forward.5} parent=11 // pred_check_branch
          %167 = sbr.rel (%p165) target = $region16
        $region15: #{classifier_forward.5} parent=11 // pred_region
          _
        $region16: #{classifier_forward.5} parent=11 // pred_fallthru
          _
        // Predicated region
        $region17: #{classifier_forward.5} parent=11 // pred_check
          %p168 = pneg %p82
        $region18: #{classifier_forward.5} parent=11 // pred_check_branch
          %170 = sbr.rel (%p168) target = $region20
        $region19: #{classifier_forward.5} parent=11 // pred_region
          _
        $region20: #{classifier_forward.5} parent=11 // pred_fallthru
          _
        // Predicated region
        $region21: #{classifier_forward.5} parent=11 // pred_check
          %p171 = pneg %p103
        $region22: #{classifier_forward.5} parent=11 // pred_check_branch
          %173 = sbr.rel (%p171) target = $region24
        $region23: #{classifier_forward.5} parent=11 // pred_region
          _
        $region24: #{classifier_forward.5} parent=11 // pred_fallthru
          _
        // Predicated region
        $region25: #{classifier_forward.5} parent=11 // pred_check
          %p174 = pneg %p124
        $region26: #{classifier_forward.5} parent=11 // pred_check_branch
          %176 = sbr.rel (%p174) target = $region28
        $region27: #{classifier_forward.5} parent=11 // pred_region
          _
        $region28: #{classifier_forward.5} parent=11 // pred_fallthru
          _
      $region12: #{classifier_forward.5} parent=5 // pred_fallthru
        _
      %p177 = scmp.lt.s32.totalorder %s14, 2
      // Predicated region
      $region29: #{classifier_forward.5} parent=5 // pred_check
        %p178 = pneg %p177
      $region30: #{classifier_forward.5} parent=5 // pred_check_branch
        %180 = sbr.rel (%p178) target = $region32
      $region31: #{classifier_forward.5} parent=5 // pred_region
        // Predicated region
        $region33: #{classifier_forward.5} parent=31 // pred_check
          %p181 = pneg %p34
        $region34: #{classifier_forward.5} parent=31 // pred_check_branch
          %183 = sbr.rel (%p181) target = $region36
        $region35: #{classifier_forward.5} parent=31 // pred_region
          %p184 = scmp.lt.s32.totalorder %s14, 1
          %s185 = scalar_select %p184, %s14, 1
          %s186 = smul.addr %s185, 7
          %s187 = scalar_lea.vmem %s0, %s186
        $region36: #{classifier_forward.5} parent=31 // pred_fallthru
          _
      $region32: #{classifier_forward.5} parent=5 // pred_fallthru
        _
      %p188 = scmp.le.s32.totalorder 1, %s14
      %p189 = scmp.lt.s32.totalorder %s14, 3
      %p190 = pnand %p188, %p189
      %p191 = pneg %p190
      // Predicated region
      $region37: #{classifier_forward.5} parent=5 // pred_check
        _
      $region38: #{classifier_forward.5} parent=5 // pred_check_branch
        %193 = sbr.rel (%p190) target = $region40
      $region39: #{classifier_forward.5} parent=5 // pred_region
        %s194 = ssub.s32 %s14, 1
        %p195 = scmp.lt.s32.totalorder %s19, 1
        %s196 = scalar_select %p195, %s19, 1
        %s197 = smul.addr %s196, 7
        %s198 = scalar_lea.vmem %s0, %s197
        %p199 = pneg %p40
        %p200 = pneg %p37
        %p201 = pneg %p61
        %p202 = pneg %p58
        %p203 = pneg %p82
        %p204 = pneg %p79
        %p205 = pneg %p103
        %p206 = pneg %p100
        %p207 = pneg %p124
        %p208 = pneg %p121
        %p209 = pneg %p150
        %p210 = pneg %p147
        %s211 = sand.u32 %s137, 1
        %s212 = scalar_lea.sflag [#allocation3], %s211
        %s213 = sand.u32 %s137, 1
        %s214 = scalar_lea.vmem [#allocation2], %s213
        %p215 = scmp.lt.s32.totalorder %s19, 1
        %s216 = scalar_select %p215, %s19, 1
        %s217 = smul.addr %s216, 7
        %s218 = scalar_lea.vmem %s0, %s217
        %v220 = vld [vmem:[%s218] sm:$0x7f]
        %v221 = vld [vmem:[%s1] sm:$0xff]
        %v222 = vld [vmem:[%s1 + $0x8] sm:$0xff]
        %v223 = vld [vmem:[%s1 + $0x10] sm:$0xff]
        %v224 = vld [vmem:[%s1 + $0x18] sm:$0xff]
        %v225 = vld [vmem:[%s1 + $0x20] sm:$0xff]
        %v226 = vld [vmem:[%s1 + $0x28] sm:$0xff]
        %v227 = vld [vmem:[%s1 + $0x30] sm:$0xff]
        %v228 = vld [vmem:[%s1 + $0x38] sm:$0xff]
        %v229 = vld [vmem:[%s1 + $0x40] sm:$0xff]
        %v230 = vld [vmem:[%s1 + $0x48] sm:$0xff]
        %v231 = vld [vmem:[%s1 + $0x50] sm:$0xff]
        %v232 = vld [vmem:[%s1 + $0x58] sm:$0xff]
        %v233 = vld [vmem:[%s1 + $0x60] sm:$0xff]
        %v234 = vld [vmem:[%s1 + $0x68] sm:$0xff]
        %v235 = vld [vmem:[%s1 + $0x70] sm:$0xff]
        %v236 = vld [vmem:[%s1 + $0x78] sm:$0xff]
        %v237 = vld [vmem:[%s1 + $0x80] sm:$0xff]
        %v238 = vld [vmem:[%s1 + $0x88] sm:$0xff]
        %v239 = vld [vmem:[%s1 + $0x90] sm:$0xff]
        %v240 = vld [vmem:[%s1 + $0x98] sm:$0xff]
        %v241 = vld [vmem:[%s1 + $0xa0] sm:$0xff]
        %v242 = vld [vmem:[%s1 + $0xa8] sm:$0xff]
        %v243 = vld [vmem:[%s1 + $0xb0] sm:$0xff]
        %v244 = vld [vmem:[%s1 + $0xb8] sm:$0xff]
        %v245 = vld [vmem:[%s1 + $0xc0] sm:$0xff]
        %v246 = vld [vmem:[%s1 + $0xc8] sm:$0xff]
        %v247 = vld [vmem:[%s1 + $0xd0] sm:$0xff]
        %v248 = vld [vmem:[%s1 + $0xd8] sm:$0xff]
        %v249 = vld [vmem:[%s1 + $0xe0] sm:$0xff]
        %v250 = vld [vmem:[%s1 + $0xe8] sm:$0xff]
        %v251 = vld [vmem:[%s1 + $0xf0] sm:$0xff]
        %v252 = vld [vmem:[%s1 + $0xf8] sm:$0xff]
        %v253 = vld [vmem:[%s1 + $0x100] sm:$0xff]
        %v254 = vld [vmem:[%s1 + $0x108] sm:$0xff]
        %v255 = vld [vmem:[%s1 + $0x110] sm:$0xff]
        %v256 = vld [vmem:[%s1 + $0x118] sm:$0xff]
        %v257 = vld [vmem:[%s1 + $0x120] sm:$0xff]
        %v258 = vld [vmem:[%s1 + $0x128] sm:$0xff]
        %v259 = vld [vmem:[%s1 + $0x130] sm:$0xff]
        %v260 = vld [vmem:[%s1 + $0x138] sm:$0xff]
        %v261 = vld [vmem:[%s1 + $0x140] sm:$0xff]
        %v262 = vld [vmem:[%s1 + $0x148] sm:$0xff]
        %v263 = vld [vmem:[%s1 + $0x150] sm:$0xff]
        %v264 = vld [vmem:[%s1 + $0x158] sm:$0xff]
        %v265 = vld [vmem:[%s1 + $0x160] sm:$0xff]
        %v266 = vld [vmem:[%s1 + $0x168] sm:$0xff]
        %v267 = vld [vmem:[%s1 + $0x170] sm:$0xff]
        %v268 = vld [vmem:[%s1 + $0x178] sm:$0xff]
        %v269 = vld [vmem:[%s1 + $0x180] sm:$0xff]
        %v270 = vld [vmem:[%s1 + $0x188] sm:$0xff]
        %v271 = vld [vmem:[%s1 + $0x190] sm:$0xff]
        %v272 = vld [vmem:[%s1 + $0x198] sm:$0xff]
        %v273 = vld [vmem:[%s1 + $0x1a0] sm:$0xff]
        %v274 = vld [vmem:[%s1 + $0x1a8] sm:$0xff]
        %v275 = vld [vmem:[%s1 + $0x1b0] sm:$0xff]
        %v276 = vld [vmem:[%s1 + $0x1b8] sm:$0xff]
        %v277 = vld [vmem:[%s1 + $0x1c0] sm:$0xff]
        %v278 = vld [vmem:[%s1 + $0x1c8] sm:$0xff]
        %v279 = vld [vmem:[%s1 + $0x1d0] sm:$0xff]
        %v280 = vld [vmem:[%s1 + $0x1d8] sm:$0xff]
        %v281 = vld [vmem:[%s1 + $0x1e0] sm:$0xff]
        %v282 = vld [vmem:[%s1 + $0x1e8] sm:$0xff]
        %v283 = vld [vmem:[%s1 + $0x1f0] sm:$0xff]
        %v284 = vld [vmem:[%s1 + $0x1f8] sm:$0xff]
        %v285 = vld [vmem:[%s1 + $0x200] sm:$0xff]
        %v286 = vld [vmem:[%s1 + $0x208] sm:$0xff]
        %v287 = vld [vmem:[%s1 + $0x210] sm:$0xff]
        %v288 = vld [vmem:[%s1 + $0x218] sm:$0xff]
        %v289 = vld [vmem:[%s1 + $0x220] sm:$0xff]
        %v290 = vld [vmem:[%s1 + $0x228] sm:$0xff]
        %v291 = vld [vmem:[%s1 + $0x230] sm:$0xff]
        %v292 = vld [vmem:[%s1 + $0x238] sm:$0xff]
        %v293 = vld [vmem:[%s1 + $0x240] sm:$0xff]
        %v294 = vld [vmem:[%s1 + $0x248] sm:$0xff]
        %v295 = vld [vmem:[%s1 + $0x250] sm:$0xff]
        %v296 = vld [vmem:[%s1 + $0x258] sm:$0xff]
        %v297 = vld [vmem:[%s1 + $0x260] sm:$0xff]
        %v298 = vld [vmem:[%s1 + $0x268] sm:$0xff]
        %v299 = vld [vmem:[%s1 + $0x270] sm:$0xff]
        %v300 = vld [vmem:[%s1 + $0x278] sm:$0xff]
        %v301 = vld [vmem:[%s1 + $0x280] sm:$0xff]
        %v302 = vld [vmem:[%s1 + $0x288] sm:$0xff]
        %v303 = vld [vmem:[%s1 + $0x290] sm:$0xff]
        %v304 = vld [vmem:[%s1 + $0x298] sm:$0xff]
        %v305 = vld [vmem:[%s1 + $0x2a0] sm:$0xff]
        %v306 = vld [vmem:[%s1 + $0x2a8] sm:$0xff]
        %v307 = vld [vmem:[%s1 + $0x2b0] sm:$0xff]
        %v308 = vld [vmem:[%s1 + $0x2b8] sm:$0xff]
        %v309 = vld [vmem:[%s1 + $0x2c0] sm:$0xff]
        %v310 = vld [vmem:[%s1 + $0x2c8] sm:$0xff]
        %v311 = vld [vmem:[%s1 + $0x2d0] sm:$0xff]
        %v312 = vld [vmem:[%s1 + $0x2d8] sm:$0xff]
        %v313 = vld [vmem:[%s1 + $0x2e0] sm:$0xff]
        %v314 = vld [vmem:[%s1 + $0x2e8] sm:$0xff]
        %v315 = vld [vmem:[%s1 + $0x2f0] sm:$0xff]
        %v316 = vld [vmem:[%s1 + $0x2f8] sm:$0xff]
        %v317 = vld [vmem:[%s1 + $0x300] sm:$0xff]
        %v318 = vld [vmem:[%s1 + $0x308] sm:$0xff]
        %v319 = vld [vmem:[%s1 + $0x310] sm:$0xff]
        %v320 = vld [vmem:[%s1 + $0x318] sm:$0xff]
        %v321 = vld [vmem:[%s1 + $0x320] sm:$0xff]
        %v322 = vld [vmem:[%s1 + $0x328] sm:$0xff]
        %v323 = vld [vmem:[%s1 + $0x330] sm:$0xff]
        %v324 = vld [vmem:[%s1 + $0x338] sm:$0xff]
        %v325 = vld [vmem:[%s1 + $0x340] sm:$0xff]
        %v326 = vld [vmem:[%s1 + $0x348] sm:$0xff]
        %v327 = vld [vmem:[%s1 + $0x350] sm:$0xff]
        %v328 = vld [vmem:[%s1 + $0x358] sm:$0xff]
        %v329 = vld [vmem:[%s1 + $0x360] sm:$0xff]
        %v330 = vld [vmem:[%s1 + $0x368] sm:$0xff]
        %v331 = vld [vmem:[%s1 + $0x370] sm:$0xff]
        %v332 = vld [vmem:[%s1 + $0x378] sm:$0xff]
        %v333 = vld [vmem:[%s1 + $0x380] sm:$0xff]
        %v334 = vld [vmem:[%s1 + $0x388] sm:$0xff]
        %v335 = vld [vmem:[%s1 + $0x390] sm:$0xff]
        %v336 = vld [vmem:[%s1 + $0x398] sm:$0xff]
        %v337 = vld [vmem:[%s1 + $0x3a0] sm:$0xff]
        %v338 = vld [vmem:[%s1 + $0x3a8] sm:$0xff]
        %v339 = vld [vmem:[%s1 + $0x3b0] sm:$0xff]
        %v340 = vld [vmem:[%s1 + $0x3b8] sm:$0xff]
        %v341 = vld [vmem:[%s1 + $0x3c0] sm:$0xff]
        %v342 = vld [vmem:[%s1 + $0x3c8] sm:$0xff]
        %v343 = vld [vmem:[%s1 + $0x3d0] sm:$0xff]
        %v344 = vld [vmem:[%s1 + $0x3d8] sm:$0xff]
        %v345 = vld [vmem:[%s1 + $0x3e0] sm:$0xff]
        %v346 = vld [vmem:[%s1 + $0x3e8] sm:$0xff]
        %v347 = vld [vmem:[%s1 + $0x3f0] sm:$0xff]
        %v348 = vld [vmem:[%s1 + $0x3f8] sm:$0xff]
        %v349 = vld [vmem:[%s1 + $0x400] sm:$0xff]
        %v350 = vld [vmem:[%s1 + $0x408] sm:$0xff]
        %v351 = vld [vmem:[%s1 + $0x410] sm:$0xff]
        %v352 = vld [vmem:[%s1 + $0x418] sm:$0xff]
        %v353 = vld [vmem:[%s1 + $0x420] sm:$0xff]
        %v354 = vld [vmem:[%s1 + $0x428] sm:$0xff]
        %v355 = vld [vmem:[%s1 + $0x430] sm:$0xff]
        %v356 = vld [vmem:[%s1 + $0x438] sm:$0xff]
        %v357 = vld [vmem:[%s1 + $0x440] sm:$0xff]
        %v358 = vld [vmem:[%s1 + $0x448] sm:$0xff]
        %v359 = vld [vmem:[%s1 + $0x450] sm:$0xff]
        %v360 = vld [vmem:[%s1 + $0x458] sm:$0xff]
        %v361 = vld [vmem:[%s1 + $0x460] sm:$0xff]
        %v362 = vld [vmem:[%s1 + $0x468] sm:$0xff]
        %v363 = vld [vmem:[%s1 + $0x470] sm:$0xff]
        %v364 = vld [vmem:[%s1 + $0x478] sm:$0xff]
        %v365 = vld [vmem:[%s1 + $0x480] sm:$0xff]
        %v366 = vld [vmem:[%s1 + $0x488] sm:$0xff]
        %v367 = vld [vmem:[%s1 + $0x490] sm:$0xff]
        %v368 = vld [vmem:[%s1 + $0x498] sm:$0xff]
        %v369 = vld [vmem:[%s1 + $0x4a0] sm:$0xff]
        %v370 = vld [vmem:[%s1 + $0x4a8] sm:$0xff]
        %v371 = vld [vmem:[%s1 + $0x4b0] sm:$0xff]
        %v372 = vld [vmem:[%s1 + $0x4b8] sm:$0xff]
        %v373 = vld [vmem:[%s1 + $0x4c0] sm:$0xff]
        %v374 = vld [vmem:[%s1 + $0x4c8] sm:$0xff]
        %v375 = vld [vmem:[%s1 + $0x4d0] sm:$0xff]
        %v376 = vld [vmem:[%s1 + $0x4d8] sm:$0xff]
        %v377 = vld [vmem:[%s1 + $0x4e0] sm:$0xff]
        %v378 = vld [vmem:[%s1 + $0x4e8] sm:$0xff]
        %v379 = vld [vmem:[%s1 + $0x4f0] sm:$0xff]
        %v380 = vld [vmem:[%s1 + $0x4f8] sm:$0xff]
        %v381 = vld [vmem:[%s1 + $0x500] sm:$0xff]
        %v382 = vld [vmem:[%s1 + $0x508] sm:$0xff]
        %v383 = vld [vmem:[%s1 + $0x510] sm:$0xff]
        %v384 = vld [vmem:[%s1 + $0x518] sm:$0xff]
        %v385 = vld [vmem:[%s1 + $0x520] sm:$0xff]
        %v386 = vld [vmem:[%s1 + $0x528] sm:$0xff]
        %v387 = vld [vmem:[%s1 + $0x530] sm:$0xff]
        %v388 = vld [vmem:[%s1 + $0x538] sm:$0xff]
        %v389 = vld [vmem:[%s1 + $0x540] sm:$0xff]
        %v390 = vld [vmem:[%s1 + $0x548] sm:$0xff]
        %v391 = vld [vmem:[%s1 + $0x550] sm:$0xff]
        %v392 = vld [vmem:[%s1 + $0x558] sm:$0xff]
        %v393 = vld [vmem:[%s1 + $0x560] sm:$0xff]
        %v394 = vld [vmem:[%s1 + $0x568] sm:$0xff]
        %v395 = vld [vmem:[%s1 + $0x570] sm:$0xff]
        %v396 = vld [vmem:[%s1 + $0x578] sm:$0xff]
        %v397 = vld [vmem:[%s1 + $0x580] sm:$0xff]
        %v398 = vld [vmem:[%s1 + $0x588] sm:$0xff]
        %v399 = vld [vmem:[%s1 + $0x590] sm:$0xff]
        %v400 = vld [vmem:[%s1 + $0x598] sm:$0xff]
        %v401 = vld [vmem:[%s1 + $0x5a0] sm:$0xff]
        %v402 = vld [vmem:[%s1 + $0x5a8] sm:$0xff]
        %v403 = vld [vmem:[%s1 + $0x5b0] sm:$0xff]
        %v404 = vld [vmem:[%s1 + $0x5b8] sm:$0xff]
        %v405 = vld [vmem:[%s1 + $0x5c0] sm:$0xff]
        %v406 = vld [vmem:[%s1 + $0x5c8] sm:$0xff]
        %v407 = vld [vmem:[%s1 + $0x5d0] sm:$0xff]
        %v408 = vld [vmem:[%s1 + $0x5d8] sm:$0xff]
        %v409 = vld [vmem:[%s1 + $0x5e0] sm:$0xff]
        %v410 = vld [vmem:[%s1 + $0x5e8] sm:$0xff]
        %v411 = vld [vmem:[%s1 + $0x5f0] sm:$0xff]
        %v412 = vld [vmem:[%s1 + $0x5f8] sm:$0xff]
        %v413 = vld [vmem:[%s1 + $0x600] sm:$0xff]
        %v414 = vld [vmem:[%s1 + $0x608] sm:$0xff]
        %v415 = vld [vmem:[%s1 + $0x610] sm:$0xff]
        %v416 = vld [vmem:[%s1 + $0x618] sm:$0xff]
        %v417 = vld [vmem:[%s1 + $0x620] sm:$0xff]
        %v418 = vld [vmem:[%s1 + $0x628] sm:$0xff]
        %v419 = vld [vmem:[%s1 + $0x630] sm:$0xff]
        %v420 = vld [vmem:[%s1 + $0x638] sm:$0xff]
        %v421 = vld [vmem:[%s2] sm:$0xf]
        %423 = vst [vmem:[#allocation1] ss:$9 sm:$0xff] %v220
        %v424 = vld [vmem:[#allocation1] sm:$0xff]
        %v425 = vld [vmem:[#allocation1 + $0x9] sm:$0xff]
        %v426 = vld [vmem:[#allocation1 + $0x12] sm:$0xff]
        %v427 = vld [vmem:[#allocation1 + $0x1b] sm:$0xff]
        %v428 = vld [vmem:[#allocation1 + $0x24] sm:$0xff]
        %v429 = vld [vmem:[#allocation1 + $0x2d] sm:$0xff]
        %v430 = vld [vmem:[#allocation1 + $0x36] sm:$0xff]
        %v637 = vunpack.c.l.b16 %v221
        %v638 = vunpack.c.h.b16 %v221
        %v639 = vunpack.c.l.b16 %v222
        %v640 = vunpack.c.h.b16 %v222
        %v641 = vunpack.c.l.b16 %v223
        %v642 = vunpack.c.h.b16 %v223
        %v643 = vunpack.c.l.b16 %v224
        %v644 = vunpack.c.h.b16 %v224
        %v645 = vunpack.c.l.b16 %v225
        %v646 = vunpack.c.h.b16 %v225
        %v647 = vunpack.c.l.b16 %v226
        %v648 = vunpack.c.h.b16 %v226
        %v649 = vunpack.c.l.b16 %v227
        %v650 = vunpack.c.h.b16 %v227
        %v651 = vunpack.c.l.b16 %v228
        %v652 = vunpack.c.h.b16 %v228
        %v653 = vunpack.c.l.b16 %v229
        %v654 = vunpack.c.h.b16 %v229
        %v655 = vunpack.c.l.b16 %v230
        %v656 = vunpack.c.h.b16 %v230
        %v657 = vunpack.c.l.b16 %v231
        %v658 = vunpack.c.h.b16 %v231
        %v659 = vunpack.c.l.b16 %v232
        %v660 = vunpack.c.h.b16 %v232
        %v661 = vunpack.c.l.b16 %v233
        %v662 = vunpack.c.h.b16 %v233
        %v663 = vunpack.c.l.b16 %v234
        %v664 = vunpack.c.h.b16 %v234
        %v665 = vunpack.c.l.b16 %v235
        %v666 = vunpack.c.h.b16 %v235
        %v667 = vunpack.c.l.b16 %v236
        %v668 = vunpack.c.h.b16 %v236
        %v669 = vunpack.c.l.b16 %v237
        %v670 = vunpack.c.h.b16 %v237
        %v671 = vunpack.c.l.b16 %v238
        %v672 = vunpack.c.h.b16 %v238
        %v673 = vunpack.c.l.b16 %v239
        %v674 = vunpack.c.h.b16 %v239
        %v675 = vunpack.c.l.b16 %v240
        %v676 = vunpack.c.h.b16 %v240
        %v677 = vunpack.c.l.b16 %v241
        %v678 = vunpack.c.h.b16 %v241
        %v679 = vunpack.c.l.b16 %v242
        %v680 = vunpack.c.h.b16 %v242
        %v681 = vunpack.c.l.b16 %v243
        %v682 = vunpack.c.h.b16 %v243
        %v683 = vunpack.c.l.b16 %v244
        %v684 = vunpack.c.h.b16 %v244
        %v685 = vunpack.c.l.b16 %v245
        %v686 = vunpack.c.h.b16 %v245
        %v687 = vunpack.c.l.b16 %v246
        %v688 = vunpack.c.h.b16 %v246
        %v689 = vunpack.c.l.b16 %v247
        %v690 = vunpack.c.h.b16 %v247
        %v691 = vunpack.c.l.b16 %v248
        %v692 = vunpack.c.h.b16 %v248
        %v693 = vunpack.c.l.b16 %v249
        %v694 = vunpack.c.h.b16 %v249
        %v695 = vunpack.c.l.b16 %v250
        %v696 = vunpack.c.h.b16 %v250
        %v697 = vunpack.c.l.b16 %v251
        %v698 = vunpack.c.h.b16 %v251
        %v699 = vunpack.c.l.b16 %v252
        %v700 = vunpack.c.h.b16 %v252
        %v701 = vunpack.c.l.b16 %v253
        %v702 = vunpack.c.h.b16 %v253
        %v703 = vunpack.c.l.b16 %v254
        %v704 = vunpack.c.h.b16 %v254
        %v705 = vunpack.c.l.b16 %v255
        %v706 = vunpack.c.h.b16 %v255
        %v707 = vunpack.c.l.b16 %v256
        %v708 = vunpack.c.h.b16 %v256
        %v709 = vunpack.c.l.b16 %v257
        %v710 = vunpack.c.h.b16 %v257
        %v711 = vunpack.c.l.b16 %v258
        %v712 = vunpack.c.h.b16 %v258
        %v713 = vunpack.c.l.b16 %v259
        %v714 = vunpack.c.h.b16 %v259
        %v715 = vunpack.c.l.b16 %v260
        %v716 = vunpack.c.h.b16 %v260
        %v717 = vunpack.c.l.b16 %v261
        %v718 = vunpack.c.h.b16 %v261
        %v719 = vunpack.c.l.b16 %v262
        %v720 = vunpack.c.h.b16 %v262
        %v721 = vunpack.c.l.b16 %v263
        %v722 = vunpack.c.h.b16 %v263
        %v723 = vunpack.c.l.b16 %v264
        %v724 = vunpack.c.h.b16 %v264
        %v725 = vunpack.c.l.b16 %v265
        %v726 = vunpack.c.h.b16 %v265
        %v727 = vunpack.c.l.b16 %v266
        %v728 = vunpack.c.h.b16 %v266
        %v729 = vunpack.c.l.b16 %v267
        %v730 = vunpack.c.h.b16 %v267
        %v731 = vunpack.c.l.b16 %v268
        %v732 = vunpack.c.h.b16 %v268
        %v733 = vunpack.c.l.b16 %v269
        %v734 = vunpack.c.h.b16 %v269
        %v735 = vunpack.c.l.b16 %v270
        %v736 = vunpack.c.h.b16 %v270
        %v737 = vunpack.c.l.b16 %v271
        %v738 = vunpack.c.h.b16 %v271
        %v739 = vunpack.c.l.b16 %v272
        %v740 = vunpack.c.h.b16 %v272
        %v741 = vunpack.c.l.b16 %v273
        %v742 = vunpack.c.h.b16 %v273
        %v743 = vunpack.c.l.b16 %v274
        %v744 = vunpack.c.h.b16 %v274
        %v745 = vunpack.c.l.b16 %v275
        %v746 = vunpack.c.h.b16 %v275
        %v747 = vunpack.c.l.b16 %v276
        %v748 = vunpack.c.h.b16 %v276
        %v749 = vunpack.c.l.b16 %v277
        %v750 = vunpack.c.h.b16 %v277
        %v751 = vunpack.c.l.b16 %v278
        %v752 = vunpack.c.h.b16 %v278
        %v753 = vunpack.c.l.b16 %v279
        %v754 = vunpack.c.h.b16 %v279
        %v755 = vunpack.c.l.b16 %v280
        %v756 = vunpack.c.h.b16 %v280
        %v757 = vunpack.c.l.b16 %v281
        %v758 = vunpack.c.h.b16 %v281
        %v759 = vunpack.c.l.b16 %v282
        %v760 = vunpack.c.h.b16 %v282
        %v761 = vunpack.c.l.b16 %v283
        %v762 = vunpack.c.h.b16 %v283
        %v763 = vunpack.c.l.b16 %v284
        %v764 = vunpack.c.h.b16 %v284
        %v765 = vunpack.c.l.b16 %v285
        %v766 = vunpack.c.h.b16 %v285
        %v767 = vunpack.c.l.b16 %v286
        %v768 = vunpack.c.h.b16 %v286
        %v769 = vunpack.c.l.b16 %v287
        %v770 = vunpack.c.h.b16 %v287
        %v771 = vunpack.c.l.b16 %v288
        %v772 = vunpack.c.h.b16 %v288
        %v773 = vunpack.c.l.b16 %v289
        %v774 = vunpack.c.h.b16 %v289
        %v775 = vunpack.c.l.b16 %v290
        %v776 = vunpack.c.h.b16 %v290
        %v777 = vunpack.c.l.b16 %v291
        %v778 = vunpack.c.h.b16 %v291
        %v779 = vunpack.c.l.b16 %v292
        %v780 = vunpack.c.h.b16 %v292
        %v781 = vunpack.c.l.b16 %v293
        %v782 = vunpack.c.h.b16 %v293
        %v783 = vunpack.c.l.b16 %v294
        %v784 = vunpack.c.h.b16 %v294
        %v785 = vunpack.c.l.b16 %v295
        %v786 = vunpack.c.h.b16 %v295
        %v787 = vunpack.c.l.b16 %v296
        %v788 = vunpack.c.h.b16 %v296
        %v789 = vunpack.c.l.b16 %v297
        %v790 = vunpack.c.h.b16 %v297
        %v791 = vunpack.c.l.b16 %v298
        %v792 = vunpack.c.h.b16 %v298
        %v793 = vunpack.c.l.b16 %v299
        %v794 = vunpack.c.h.b16 %v299
        %v795 = vunpack.c.l.b16 %v300
        %v796 = vunpack.c.h.b16 %v300
        %v797 = vunpack.c.l.b16 %v301
        %v798 = vunpack.c.h.b16 %v301
        %v799 = vunpack.c.l.b16 %v302
        %v800 = vunpack.c.h.b16 %v302
        %v801 = vunpack.c.l.b16 %v303
        %v802 = vunpack.c.h.b16 %v303
        %v803 = vunpack.c.l.b16 %v304
        %v804 = vunpack.c.h.b16 %v304
        %v805 = vunpack.c.l.b16 %v305
        %v806 = vunpack.c.h.b16 %v305
        %v807 = vunpack.c.l.b16 %v306
        %v808 = vunpack.c.h.b16 %v306
        %v809 = vunpack.c.l.b16 %v307
        %v810 = vunpack.c.h.b16 %v307
        %v811 = vunpack.c.l.b16 %v308
        %v812 = vunpack.c.h.b16 %v308
        %v813 = vunpack.c.l.b16 %v309
        %v814 = vunpack.c.h.b16 %v309
        %v815 = vunpack.c.l.b16 %v310
        %v816 = vunpack.c.h.b16 %v310
        %v817 = vunpack.c.l.b16 %v311
        %v818 = vunpack.c.h.b16 %v311
        %v819 = vunpack.c.l.b16 %v312
        %v820 = vunpack.c.h.b16 %v312
        %v821 = vunpack.c.l.b16 %v313
        %v822 = vunpack.c.h.b16 %v313
        %v823 = vunpack.c.l.b16 %v314
        %v824 = vunpack.c.h.b16 %v314
        %v825 = vunpack.c.l.b16 %v315
        %v826 = vunpack.c.h.b16 %v315
        %v827 = vunpack.c.l.b16 %v316
        %v828 = vunpack.c.h.b16 %v316
        %v829 = vunpack.c.l.b16 %v317
        %v830 = vunpack.c.h.b16 %v317
        %v831 = vunpack.c.l.b16 %v318
        %v832 = vunpack.c.h.b16 %v318
        %v833 = vunpack.c.l.b16 %v319
        %v834 = vunpack.c.h.b16 %v319
        %v835 = vunpack.c.l.b16 %v320
        %v836 = vunpack.c.h.b16 %v320
        %v837 = vunpack.c.l.b16 %v321
        %v838 = vunpack.c.h.b16 %v321
        %v839 = vunpack.c.l.b16 %v322
        %v840 = vunpack.c.h.b16 %v322
        %v841 = vunpack.c.l.b16 %v323
        %v842 = vunpack.c.h.b16 %v323
        %v843 = vunpack.c.l.b16 %v324
        %v844 = vunpack.c.h.b16 %v324
        %v845 = vunpack.c.l.b16 %v325
        %v846 = vunpack.c.h.b16 %v325
        %v847 = vunpack.c.l.b16 %v326
        %v848 = vunpack.c.h.b16 %v326
        %v849 = vunpack.c.l.b16 %v327
        %v850 = vunpack.c.h.b16 %v327
        %v851 = vunpack.c.l.b16 %v328
        %v852 = vunpack.c.h.b16 %v328
        %v853 = vunpack.c.l.b16 %v329
        %v854 = vunpack.c.h.b16 %v329
        %v855 = vunpack.c.l.b16 %v330
        %v856 = vunpack.c.h.b16 %v330
        %v857 = vunpack.c.l.b16 %v331
        %v858 = vunpack.c.h.b16 %v331
        %v859 = vunpack.c.l.b16 %v332
        %v860 = vunpack.c.h.b16 %v332
        %v861 = vunpack.c.l.b16 %v333
        %v862 = vunpack.c.h.b16 %v333
        %v863 = vunpack.c.l.b16 %v334
        %v864 = vunpack.c.h.b16 %v334
        %v865 = vunpack.c.l.b16 %v335
        %v866 = vunpack.c.h.b16 %v335
        %v867 = vunpack.c.l.b16 %v336
        %v868 = vunpack.c.h.b16 %v336
        %v869 = vunpack.c.l.b16 %v337
        %v870 = vunpack.c.h.b16 %v337
        %v871 = vunpack.c.l.b16 %v338
        %v872 = vunpack.c.h.b16 %v338
        %v873 = vunpack.c.l.b16 %v339
        %v874 = vunpack.c.h.b16 %v339
        %v875 = vunpack.c.l.b16 %v340
        %v876 = vunpack.c.h.b16 %v340
        %v877 = vunpack.c.l.b16 %v341
        %v878 = vunpack.c.h.b16 %v341
        %v879 = vunpack.c.l.b16 %v342
        %v880 = vunpack.c.h.b16 %v342
        %v881 = vunpack.c.l.b16 %v343
        %v882 = vunpack.c.h.b16 %v343
        %v883 = vunpack.c.l.b16 %v344
        %v884 = vunpack.c.h.b16 %v344
        %v885 = vunpack.c.l.b16 %v345
        %v886 = vunpack.c.h.b16 %v345
        %v887 = vunpack.c.l.b16 %v346
        %v888 = vunpack.c.h.b16 %v346
        %v889 = vunpack.c.l.b16 %v347
        %v890 = vunpack.c.h.b16 %v347
        %v891 = vunpack.c.l.b16 %v348
        %v892 = vunpack.c.h.b16 %v348
        %v893 = vunpack.c.l.b16 %v349
        %v894 = vunpack.c.h.b16 %v349
        %v895 = vunpack.c.l.b16 %v350
        %v896 = vunpack.c.h.b16 %v350
        %v897 = vunpack.c.l.b16 %v351
        %v898 = vunpack.c.h.b16 %v351
        %v899 = vunpack.c.l.b16 %v352
        %v900 = vunpack.c.h.b16 %v352
        %v901 = vunpack.c.l.b16 %v353
        %v902 = vunpack.c.h.b16 %v353
        %v903 = vunpack.c.l.b16 %v354
        %v904 = vunpack.c.h.b16 %v354
        %v905 = vunpack.c.l.b16 %v355
        %v906 = vunpack.c.h.b16 %v355
        %v907 = vunpack.c.l.b16 %v356
        %v908 = vunpack.c.h.b16 %v356
        %v909 = vunpack.c.l.b16 %v357
        %v910 = vunpack.c.h.b16 %v357
        %v911 = vunpack.c.l.b16 %v358
        %v912 = vunpack.c.h.b16 %v358
        %v913 = vunpack.c.l.b16 %v359
        %v914 = vunpack.c.h.b16 %v359
        %v915 = vunpack.c.l.b16 %v360
        %v916 = vunpack.c.h.b16 %v360
        %v917 = vunpack.c.l.b16 %v361
        %v918 = vunpack.c.h.b16 %v361
        %v919 = vunpack.c.l.b16 %v362
        %v920 = vunpack.c.h.b16 %v362
        %v921 = vunpack.c.l.b16 %v363
        %v922 = vunpack.c.h.b16 %v363
        %v923 = vunpack.c.l.b16 %v364
        %v924 = vunpack.c.h.b16 %v364
        %v925 = vunpack.c.l.b16 %v365
        %v926 = vunpack.c.h.b16 %v365
        %v927 = vunpack.c.l.b16 %v366
        %v928 = vunpack.c.h.b16 %v366
        %v929 = vunpack.c.l.b16 %v367
        %v930 = vunpack.c.h.b16 %v367
        %v931 = vunpack.c.l.b16 %v368
        %v932 = vunpack.c.h.b16 %v368
        %v933 = vunpack.c.l.b16 %v369
        %v934 = vunpack.c.h.b16 %v369
        %v935 = vunpack.c.l.b16 %v370
        %v936 = vunpack.c.h.b16 %v370
        %v937 = vunpack.c.l.b16 %v371
        %v938 = vunpack.c.h.b16 %v371
        %v939 = vunpack.c.l.b16 %v372
        %v940 = vunpack.c.h.b16 %v372
        %v941 = vunpack.c.l.b16 %v373
        %v942 = vunpack.c.h.b16 %v373
        %v943 = vunpack.c.l.b16 %v374
        %v944 = vunpack.c.h.b16 %v374
        %v945 = vunpack.c.l.b16 %v375
        %v946 = vunpack.c.h.b16 %v375
        %v947 = vunpack.c.l.b16 %v376
        %v948 = vunpack.c.h.b16 %v376
        %v949 = vunpack.c.l.b16 %v377
        %v950 = vunpack.c.h.b16 %v377
        %v951 = vunpack.c.l.b16 %v378
        %v952 = vunpack.c.h.b16 %v378
        %v953 = vunpack.c.l.b16 %v379
        %v954 = vunpack.c.h.b16 %v379
        %v955 = vunpack.c.l.b16 %v380
        %v956 = vunpack.c.h.b16 %v380
        %v957 = vunpack.c.l.b16 %v381
        %v958 = vunpack.c.h.b16 %v381
        %v959 = vunpack.c.l.b16 %v382
        %v960 = vunpack.c.h.b16 %v382
        %v961 = vunpack.c.l.b16 %v383
        %v962 = vunpack.c.h.b16 %v383
        %v963 = vunpack.c.l.b16 %v384
        %v964 = vunpack.c.h.b16 %v384
        %v965 = vunpack.c.l.b16 %v385
        %v966 = vunpack.c.h.b16 %v385
        %v967 = vunpack.c.l.b16 %v386
        %v968 = vunpack.c.h.b16 %v386
        %v969 = vunpack.c.l.b16 %v387
        %v970 = vunpack.c.h.b16 %v387
        %v971 = vunpack.c.l.b16 %v388
        %v972 = vunpack.c.h.b16 %v388
        %v973 = vunpack.c.l.b16 %v389
        %v974 = vunpack.c.h.b16 %v389
        %v975 = vunpack.c.l.b16 %v390
        %v976 = vunpack.c.h.b16 %v390
        %v977 = vunpack.c.l.b16 %v391
        %v978 = vunpack.c.h.b16 %v391
        %v979 = vunpack.c.l.b16 %v392
        %v980 = vunpack.c.h.b16 %v392
        %v981 = vunpack.c.l.b16 %v393
        %v982 = vunpack.c.h.b16 %v393
        %v983 = vunpack.c.l.b16 %v394
        %v984 = vunpack.c.h.b16 %v394
        %v985 = vunpack.c.l.b16 %v395
        %v986 = vunpack.c.h.b16 %v395
        %v987 = vunpack.c.l.b16 %v396
        %v988 = vunpack.c.h.b16 %v396
        %v989 = vunpack.c.l.b16 %v397
        %v990 = vunpack.c.h.b16 %v397
        %v991 = vunpack.c.l.b16 %v398
        %v992 = vunpack.c.h.b16 %v398
        %v993 = vunpack.c.l.b16 %v399
        %v994 = vunpack.c.h.b16 %v399
        %v995 = vunpack.c.l.b16 %v400
        %v996 = vunpack.c.h.b16 %v400
        %v997 = vunpack.c.l.b16 %v401
        %v998 = vunpack.c.h.b16 %v401
        %v999 = vunpack.c.l.b16 %v402
        %v1000 = vunpack.c.h.b16 %v402
        %v1001 = vunpack.c.l.b16 %v403
        %v1002 = vunpack.c.h.b16 %v403
        %v1003 = vunpack.c.l.b16 %v404
        %v1004 = vunpack.c.h.b16 %v404
        %v1005 = vunpack.c.l.b16 %v405
        %v1006 = vunpack.c.h.b16 %v405
        %v1007 = vunpack.c.l.b16 %v406
        %v1008 = vunpack.c.h.b16 %v406
        %v1009 = vunpack.c.l.b16 %v407
        %v1010 = vunpack.c.h.b16 %v407
        %v1011 = vunpack.c.l.b16 %v408
        %v1012 = vunpack.c.h.b16 %v408
        %v1013 = vunpack.c.l.b16 %v409
        %v1014 = vunpack.c.h.b16 %v409
        %v1015 = vunpack.c.l.b16 %v410
        %v1016 = vunpack.c.h.b16 %v410
        %v1017 = vunpack.c.l.b16 %v411
        %v1018 = vunpack.c.h.b16 %v411
        %v1019 = vunpack.c.l.b16 %v412
        %v1020 = vunpack.c.h.b16 %v412
        %v1021 = vunpack.c.l.b16 %v413
        %v1022 = vunpack.c.h.b16 %v413
        %v1023 = vunpack.c.l.b16 %v414
        %v1024 = vunpack.c.h.b16 %v414
        %v1025 = vunpack.c.l.b16 %v415
        %v1026 = vunpack.c.h.b16 %v415
        %v1027 = vunpack.c.l.b16 %v416
        %v1028 = vunpack.c.h.b16 %v416
        %v1029 = vunpack.c.l.b16 %v417
        %v1030 = vunpack.c.h.b16 %v417
        %v1031 = vunpack.c.l.b16 %v418
        %v1032 = vunpack.c.h.b16 %v418
        %v1033 = vunpack.c.l.b16 %v419
        %v1034 = vunpack.c.h.b16 %v419
        %v1035 = vunpack.c.l.b16 %v420
        %v1036 = vunpack.c.h.b16 %v420
        %v1037 = vpack.c.b16 %v641, %v637
        %v1038 = vpack.c.b16 %v642, %v638
        %v1039 = vpack.c.b16 %v643, %v639
        %v1040 = vpack.c.b16 %v644, %v640
        %v1041 = vpack.c.b16 %v649, %v645
        %v1042 = vpack.c.b16 %v650, %v646
        %v1043 = vpack.c.b16 %v651, %v647
        %v1044 = vpack.c.b16 %v652, %v648
        %v1045 = vpack.c.b16 %v657, %v653
        %v1046 = vpack.c.b16 %v658, %v654
        %v1047 = vpack.c.b16 %v659, %v655
        %v1048 = vpack.c.b16 %v660, %v656
        %v1049 = vpack.c.b16 %v665, %v661
        %v1050 = vpack.c.b16 %v666, %v662
        %v1051 = vpack.c.b16 %v667, %v663
        %v1052 = vpack.c.b16 %v668, %v664
        %v1053 = vpack.c.b16 %v673, %v669
        %v1054 = vpack.c.b16 %v674, %v670
        %v1055 = vpack.c.b16 %v675, %v671
        %v1056 = vpack.c.b16 %v676, %v672
        %v1057 = vpack.c.b16 %v681, %v677
        %v1058 = vpack.c.b16 %v682, %v678
        %v1059 = vpack.c.b16 %v683, %v679
        %v1060 = vpack.c.b16 %v684, %v680
        %v1061 = vpack.c.b16 %v689, %v685
        %v1062 = vpack.c.b16 %v690, %v686
        %v1063 = vpack.c.b16 %v691, %v687
        %v1064 = vpack.c.b16 %v692, %v688
        %v1065 = vpack.c.b16 %v697, %v693
        %v1066 = vpack.c.b16 %v698, %v694
        %v1067 = vpack.c.b16 %v699, %v695
        %v1068 = vpack.c.b16 %v700, %v696
        %v1069 = vpack.c.b16 %v705, %v701
        %v1070 = vpack.c.b16 %v706, %v702
        %v1071 = vpack.c.b16 %v707, %v703
        %v1072 = vpack.c.b16 %v708, %v704
        %v1073 = vpack.c.b16 %v713, %v709
        %v1074 = vpack.c.b16 %v714, %v710
        %v1075 = vpack.c.b16 %v715, %v711
        %v1076 = vpack.c.b16 %v716, %v712
        %v1077 = vpack.c.b16 %v721, %v717
        %v1078 = vpack.c.b16 %v722, %v718
        %v1079 = vpack.c.b16 %v723, %v719
        %v1080 = vpack.c.b16 %v724, %v720
        %v1081 = vpack.c.b16 %v729, %v725
        %v1082 = vpack.c.b16 %v730, %v726
        %v1083 = vpack.c.b16 %v731, %v727
        %v1084 = vpack.c.b16 %v732, %v728
        %v1085 = vpack.c.b16 %v737, %v733
        %v1086 = vpack.c.b16 %v738, %v734
        %v1087 = vpack.c.b16 %v739, %v735
        %v1088 = vpack.c.b16 %v740, %v736
        %v1089 = vpack.c.b16 %v745, %v741
        %v1090 = vpack.c.b16 %v746, %v742
        %v1091 = vpack.c.b16 %v747, %v743
        %v1092 = vpack.c.b16 %v748, %v744
        %v1093 = vpack.c.b16 %v753, %v749
        %v1094 = vpack.c.b16 %v754, %v750
        %v1095 = vpack.c.b16 %v755, %v751
        %v1096 = vpack.c.b16 %v756, %v752
        %v1097 = vpack.c.b16 %v761, %v757
        %v1098 = vpack.c.b16 %v762, %v758
        %v1099 = vpack.c.b16 %v763, %v759
        %v1100 = vpack.c.b16 %v764, %v760
        %v1101 = vpack.c.b16 %v769, %v765
        %v1102 = vpack.c.b16 %v770, %v766
        %v1103 = vpack.c.b16 %v771, %v767
        %v1104 = vpack.c.b16 %v772, %v768
        %v1105 = vpack.c.b16 %v777, %v773
        %v1106 = vpack.c.b16 %v778, %v774
        %v1107 = vpack.c.b16 %v779, %v775
        %v1108 = vpack.c.b16 %v780, %v776
        %v1109 = vpack.c.b16 %v785, %v781
        %v1110 = vpack.c.b16 %v786, %v782
        %v1111 = vpack.c.b16 %v787, %v783
        %v1112 = vpack.c.b16 %v788, %v784
        %v1113 = vpack.c.b16 %v793, %v789
        %v1114 = vpack.c.b16 %v794, %v790
        %v1115 = vpack.c.b16 %v795, %v791
        %v1116 = vpack.c.b16 %v796, %v792
        %v1117 = vpack.c.b16 %v801, %v797
        %v1118 = vpack.c.b16 %v802, %v798
        %v1119 = vpack.c.b16 %v803, %v799
        %v1120 = vpack.c.b16 %v804, %v800
        %v1121 = vpack.c.b16 %v809, %v805
        %v1122 = vpack.c.b16 %v810, %v806
        %v1123 = vpack.c.b16 %v811, %v807
        %v1124 = vpack.c.b16 %v812, %v808
        %v1125 = vpack.c.b16 %v817, %v813
        %v1126 = vpack.c.b16 %v818, %v814
        %v1127 = vpack.c.b16 %v819, %v815
        %v1128 = vpack.c.b16 %v820, %v816
        %v1129 = vpack.c.b16 %v825, %v821
        %v1130 = vpack.c.b16 %v826, %v822
        %v1131 = vpack.c.b16 %v827, %v823
        %v1132 = vpack.c.b16 %v828, %v824
        %v1133 = vpack.c.b16 %v833, %v829
        %v1134 = vpack.c.b16 %v834, %v830
        %v1135 = vpack.c.b16 %v835, %v831
        %v1136 = vpack.c.b16 %v836, %v832
        %v1137 = vpack.c.b16 %v841, %v837
        %v1138 = vpack.c.b16 %v842, %v838
        %v1139 = vpack.c.b16 %v843, %v839
        %v1140 = vpack.c.b16 %v844, %v840
        %v1141 = vpack.c.b16 %v849, %v845
        %v1142 = vpack.c.b16 %v850, %v846
        %v1143 = vpack.c.b16 %v851, %v847
        %v1144 = vpack.c.b16 %v852, %v848
        %v1145 = vpack.c.b16 %v857, %v853
        %v1146 = vpack.c.b16 %v858, %v854
        %v1147 = vpack.c.b16 %v859, %v855
        %v1148 = vpack.c.b16 %v860, %v856
        %v1149 = vpack.c.b16 %v865, %v861
        %v1150 = vpack.c.b16 %v866, %v862
        %v1151 = vpack.c.b16 %v867, %v863
        %v1152 = vpack.c.b16 %v868, %v864
        %v1153 = vpack.c.b16 %v873, %v869
        %v1154 = vpack.c.b16 %v874, %v870
        %v1155 = vpack.c.b16 %v875, %v871
        %v1156 = vpack.c.b16 %v876, %v872
        %v1157 = vpack.c.b16 %v881, %v877
        %v1158 = vpack.c.b16 %v882, %v878
        %v1159 = vpack.c.b16 %v883, %v879
        %v1160 = vpack.c.b16 %v884, %v880
        %v1161 = vpack.c.b16 %v889, %v885
        %v1162 = vpack.c.b16 %v890, %v886
        %v1163 = vpack.c.b16 %v891, %v887
        %v1164 = vpack.c.b16 %v892, %v888
        %v1165 = vpack.c.b16 %v897, %v893
        %v1166 = vpack.c.b16 %v898, %v894
        %v1167 = vpack.c.b16 %v899, %v895
        %v1168 = vpack.c.b16 %v900, %v896
        %v1169 = vpack.c.b16 %v905, %v901
        %v1170 = vpack.c.b16 %v906, %v902
        %v1171 = vpack.c.b16 %v907, %v903
        %v1172 = vpack.c.b16 %v908, %v904
        %v1173 = vpack.c.b16 %v913, %v909
        %v1174 = vpack.c.b16 %v914, %v910
        %v1175 = vpack.c.b16 %v915, %v911
        %v1176 = vpack.c.b16 %v916, %v912
        %v1177 = vpack.c.b16 %v921, %v917
        %v1178 = vpack.c.b16 %v922, %v918
        %v1179 = vpack.c.b16 %v923, %v919
        %v1180 = vpack.c.b16 %v924, %v920
        %v1181 = vpack.c.b16 %v929, %v925
        %v1182 = vpack.c.b16 %v930, %v926
        %v1183 = vpack.c.b16 %v931, %v927
        %v1184 = vpack.c.b16 %v932, %v928
        %v1185 = vpack.c.b16 %v937, %v933
        %v1186 = vpack.c.b16 %v938, %v934
        %v1187 = vpack.c.b16 %v939, %v935
        %v1188 = vpack.c.b16 %v940, %v936
        %v1189 = vpack.c.b16 %v945, %v941
        %v1190 = vpack.c.b16 %v946, %v942
        %v1191 = vpack.c.b16 %v947, %v943
        %v1192 = vpack.c.b16 %v948, %v944
        %v1193 = vpack.c.b16 %v953, %v949
        %v1194 = vpack.c.b16 %v954, %v950
        %v1195 = vpack.c.b16 %v955, %v951
        %v1196 = vpack.c.b16 %v956, %v952
        %v1197 = vpack.c.b16 %v961, %v957
        %v1198 = vpack.c.b16 %v962, %v958
        %v1199 = vpack.c.b16 %v963, %v959
        %v1200 = vpack.c.b16 %v964, %v960
        %v1201 = vpack.c.b16 %v969, %v965
        %v1202 = vpack.c.b16 %v970, %v966
        %v1203 = vpack.c.b16 %v971, %v967
        %v1204 = vpack.c.b16 %v972, %v968
        %v1205 = vpack.c.b16 %v977, %v973
        %v1206 = vpack.c.b16 %v978, %v974
        %v1207 = vpack.c.b16 %v979, %v975
        %v1208 = vpack.c.b16 %v980, %v976
        %v1209 = vpack.c.b16 %v985, %v981
        %v1210 = vpack.c.b16 %v986, %v982
        %v1211 = vpack.c.b16 %v987, %v983
        %v1212 = vpack.c.b16 %v988, %v984
        %v1213 = vpack.c.b16 %v993, %v989
        %v1214 = vpack.c.b16 %v994, %v990
        %v1215 = vpack.c.b16 %v995, %v991
        %v1216 = vpack.c.b16 %v996, %v992
        %v1217 = vpack.c.b16 %v1001, %v997
        %v1218 = vpack.c.b16 %v1002, %v998
        %v1219 = vpack.c.b16 %v1003, %v999
        %v1220 = vpack.c.b16 %v1004, %v1000
        %v1221 = vpack.c.b16 %v1009, %v1005
        %v1222 = vpack.c.b16 %v1010, %v1006
        %v1223 = vpack.c.b16 %v1011, %v1007
        %v1224 = vpack.c.b16 %v1012, %v1008
        %v1225 = vpack.c.b16 %v1017, %v1013
        %v1226 = vpack.c.b16 %v1018, %v1014
        %v1227 = vpack.c.b16 %v1019, %v1015
        %v1228 = vpack.c.b16 %v1020, %v1016
        %v1229 = vpack.c.b16 %v1025, %v1021
        %v1230 = vpack.c.b16 %v1026, %v1022
        %v1231 = vpack.c.b16 %v1027, %v1023
        %v1232 = vpack.c.b16 %v1028, %v1024
        %v1233 = vpack.c.b16 %v1033, %v1029
        %v1234 = vpack.c.b16 %v1034, %v1030
        %v1235 = vpack.c.b16 %v1035, %v1031
        %v1236 = vpack.c.b16 %v1036, %v1032
        %v1438 = vperm.slane %v421, 0
        %v1439 = vperm.slane %v421, 1
        %v1440 = vperm.slane %v421, 2
        %v1441 = vperm.slane %v421, 3
        %vm1446 = vcmask 261120
        %v1447 = vsel %vm1446, %v430, 0
        %1449 = vmatpush.bf16.msra.mxu0 %v1065
        %1450 = vmatpush.bf16.msra.mxu0 %v1061
        %1451 = vmatpush.bf16.msra.mxu0 %v1057
        %1452 = vmatpush.bf16.msra.mxu0 %v1053
        %1453 = vmatpush.bf16.msra.mxu0 %v1049
        %1454 = vmatpush.bf16.msra.mxu0 %v1045
        %1455 = vmatpush.bf16.msra.mxu0 %v1041
        %1456 = vmatpush.bf16.msra.mxu0 %v1037
        %1457 = vmatmul.bf16.gmra.mxu0 %v424
        %v1458 = vpop.f32.mrf.mxu0
        %v1459 = vadd.f32 %v1438, %v1458
        %v1460 = vpop.f32.mrf.mxu0
        %1461 = vdwg.mxu0
        %1462 = vmatpush.bf16.msra.mxu0 %v1097
        %1463 = vmatpush.bf16.msra.mxu0 %v1093
        %1464 = vmatpush.bf16.msra.mxu0 %v1089
        %1465 = vmatpush.bf16.msra.mxu0 %v1085
        %1466 = vmatpush.bf16.msra.mxu0 %v1081
        %1467 = vmatpush.bf16.msra.mxu0 %v1077
        %1468 = vmatpush.bf16.msra.mxu0 %v1073
        %1469 = vmatpush.bf16.msra.mxu0 %v1069
        %1470 = vmatmul.bf16.gmra.mxu0 %v425
        %v1471 = vpop.f32.mrf.mxu0
        %v1472 = vadd.f32 %v1459, %v1471
        %v1473 = vpop.f32.mrf.mxu0
        %1474 = vdwg.mxu0
        %1475 = vmatpush.bf16.msra.mxu0 %v1129
        %1476 = vmatpush.bf16.msra.mxu0 %v1125
        %1477 = vmatpush.bf16.msra.mxu0 %v1121
        %1478 = vmatpush.bf16.msra.mxu0 %v1117
        %1479 = vmatpush.bf16.msra.mxu0 %v1113
        %1480 = vmatpush.bf16.msra.mxu0 %v1109
        %1481 = vmatpush.bf16.msra.mxu0 %v1105
        %1482 = vmatpush.bf16.msra.mxu0 %v1101
        %1483 = vmatmul.bf16.gmra.mxu0 %v426
        %v1484 = vpop.f32.mrf.mxu0
        %v1485 = vadd.f32 %v1472, %v1484
        %v1486 = vpop.f32.mrf.mxu0
        %1487 = vdwg.mxu0
        %1488 = vmatpush.bf16.msra.mxu0 %v1161
        %1489 = vmatpush.bf16.msra.mxu0 %v1157
        %1490 = vmatpush.bf16.msra.mxu0 %v1153
        %1491 = vmatpush.bf16.msra.mxu0 %v1149
        %1492 = vmatpush.bf16.msra.mxu0 %v1145
        %1493 = vmatpush.bf16.msra.mxu0 %v1141
        %1494 = vmatpush.bf16.msra.mxu0 %v1137
        %1495 = vmatpush.bf16.msra.mxu0 %v1133
        %1496 = vmatmul.bf16.gmra.mxu0 %v427
        %v1497 = vpop.f32.mrf.mxu0
        %v1498 = vadd.f32 %v1485, %v1497
        %v1499 = vpop.f32.mrf.mxu0
        %1500 = vdwg.mxu0
        %1501 = vmatpush.bf16.msra.mxu0 %v1193
        %1502 = vmatpush.bf16.msra.mxu0 %v1189
        %1503 = vmatpush.bf16.msra.mxu0 %v1185
        %1504 = vmatpush.bf16.msra.mxu0 %v1181
        %1505 = vmatpush.bf16.msra.mxu0 %v1177
        %1506 = vmatpush.bf16.msra.mxu0 %v1173
        %1507 = vmatpush.bf16.msra.mxu0 %v1169
        %1508 = vmatpush.bf16.msra.mxu0 %v1165
        %1509 = vmatmul.bf16.gmra.mxu0 %v428
        %v1510 = vpop.f32.mrf.mxu0
        %v1511 = vadd.f32 %v1498, %v1510
        %v1512 = vpop.f32.mrf.mxu0
        %1513 = vdwg.mxu0
        %1514 = vmatpush.bf16.msra.mxu0 %v1225
        %1515 = vmatpush.bf16.msra.mxu0 %v1221
        %1516 = vmatpush.bf16.msra.mxu0 %v1217
        %1517 = vmatpush.bf16.msra.mxu0 %v1213
        %1518 = vmatpush.bf16.msra.mxu0 %v1209
        %1519 = vmatpush.bf16.msra.mxu0 %v1205
        %1520 = vmatpush.bf16.msra.mxu0 %v1201
        %1521 = vmatpush.bf16.msra.mxu0 %v1197
        %1522 = vmatmul.bf16.gmra.mxu0 %v429
        %v1523 = vpop.f32.mrf.mxu0
        %v1524 = vadd.f32 %v1511, %v1523
        %v1525 = vpop.f32.mrf.mxu0
        %1526 = vdwg.mxu0
        %1527 = vmatpush.bf16.msra.mxu0 0
        %1528 = vmatpush.bf16.msra.mxu0 0
        %1529 = vmatpush.bf16.msra.mxu0 0
        %1530 = vmatpush.bf16.msra.mxu0 0
        %1531 = vmatpush.bf16.msra.mxu0 0
        %1532 = vmatpush.bf16.msra.mxu0 0
        %1533 = vmatpush.bf16.msra.mxu0 %v1233
        %1534 = vmatpush.bf16.msra.mxu0 %v1229
        %1535 = vmatmul.bf16.gmra.mxu0 %v1447
        %v1536 = vpop.f32.mrf.mxu0
        %v1537 = vadd.f32 %v1524, %v1536
        %v1538 = vpop.f32.mrf.mxu0
        %1539 = vdwg.mxu0
        %1540 = vmatpush.bf16.msra.mxu0 %v1066
        %1541 = vmatpush.bf16.msra.mxu0 %v1062
        %1542 = vmatpush.bf16.msra.mxu0 %v1058
        %1543 = vmatpush.bf16.msra.mxu0 %v1054
        %1544 = vmatpush.bf16.msra.mxu0 %v1050
        %1545 = vmatpush.bf16.msra.mxu0 %v1046
        %1546 = vmatpush.bf16.msra.mxu0 %v1042
        %1547 = vmatpush.bf16.msra.mxu0 %v1038
        %1548 = vmatmul.bf16.gmra.mxu0 %v424
        %v1549 = vpop.f32.mrf.mxu0
        %v1550 = vadd.f32 %v1439, %v1549
        %v1551 = vpop.f32.mrf.mxu0
        %1552 = vdwg.mxu0
        %1553 = vmatpush.bf16.msra.mxu0 %v1098
        %1554 = vmatpush.bf16.msra.mxu0 %v1094
        %1555 = vmatpush.bf16.msra.mxu0 %v1090
        %1556 = vmatpush.bf16.msra.mxu0 %v1086
        %1557 = vmatpush.bf16.msra.mxu0 %v1082
        %1558 = vmatpush.bf16.msra.mxu0 %v1078
        %1559 = vmatpush.bf16.msra.mxu0 %v1074
        %1560 = vmatpush.bf16.msra.mxu0 %v1070
        %1561 = vmatmul.bf16.gmra.mxu0 %v425
        %v1562 = vpop.f32.mrf.mxu0
        %v1563 = vadd.f32 %v1550, %v1562
        %v1564 = vpop.f32.mrf.mxu0
        %1565 = vdwg.mxu0
        %1566 = vmatpush.bf16.msra.mxu0 %v1130
        %1567 = vmatpush.bf16.msra.mxu0 %v1126
        %1568 = vmatpush.bf16.msra.mxu0 %v1122
        %1569 = vmatpush.bf16.msra.mxu0 %v1118
        %1570 = vmatpush.bf16.msra.mxu0 %v1114
        %1571 = vmatpush.bf16.msra.mxu0 %v1110
        %1572 = vmatpush.bf16.msra.mxu0 %v1106
        %1573 = vmatpush.bf16.msra.mxu0 %v1102
        %1574 = vmatmul.bf16.gmra.mxu0 %v426
        %v1575 = vpop.f32.mrf.mxu0
        %v1576 = vadd.f32 %v1563, %v1575
        %v1577 = vpop.f32.mrf.mxu0
        %1578 = vdwg.mxu0
        %1579 = vmatpush.bf16.msra.mxu0 %v1162
        %1580 = vmatpush.bf16.msra.mxu0 %v1158
        %1581 = vmatpush.bf16.msra.mxu0 %v1154
        %1582 = vmatpush.bf16.msra.mxu0 %v1150
        %1583 = vmatpush.bf16.msra.mxu0 %v1146
        %1584 = vmatpush.bf16.msra.mxu0 %v1142
        %1585 = vmatpush.bf16.msra.mxu0 %v1138
        %1586 = vmatpush.bf16.msra.mxu0 %v1134
        %1587 = vmatmul.bf16.gmra.mxu0 %v427
        %v1588 = vpop.f32.mrf.mxu0
        %v1589 = vadd.f32 %v1576, %v1588
        %v1590 = vpop.f32.mrf.mxu0
        %1591 = vdwg.mxu0
        %1592 = vmatpush.bf16.msra.mxu0 %v1194
        %1593 = vmatpush.bf16.msra.mxu0 %v1190
        %1594 = vmatpush.bf16.msra.mxu0 %v1186
        %1595 = vmatpush.bf16.msra.mxu0 %v1182
        %1596 = vmatpush.bf16.msra.mxu0 %v1178
        %1597 = vmatpush.bf16.msra.mxu0 %v1174
        %1598 = vmatpush.bf16.msra.mxu0 %v1170
        %1599 = vmatpush.bf16.msra.mxu0 %v1166
        %1600 = vmatmul.bf16.gmra.mxu0 %v428
        %v1601 = vpop.f32.mrf.mxu0
        %v1602 = vadd.f32 %v1589, %v1601
        %v1603 = vpop.f32.mrf.mxu0
        %1604 = vdwg.mxu0
        %1605 = vmatpush.bf16.msra.mxu0 %v1226
        %1606 = vmatpush.bf16.msra.mxu0 %v1222
        %1607 = vmatpush.bf16.msra.mxu0 %v1218
        %1608 = vmatpush.bf16.msra.mxu0 %v1214
        %1609 = vmatpush.bf16.msra.mxu0 %v1210
        %1610 = vmatpush.bf16.msra.mxu0 %v1206
        %1611 = vmatpush.bf16.msra.mxu0 %v1202
        %1612 = vmatpush.bf16.msra.mxu0 %v1198
        %1613 = vmatmul.bf16.gmra.mxu0 %v429
        %v1614 = vpop.f32.mrf.mxu0
        %v1615 = vadd.f32 %v1602, %v1614
        %v1616 = vpop.f32.mrf.mxu0
        %1617 = vdwg.mxu0
        %1618 = vmatpush.bf16.msra.mxu0 0
        %1619 = vmatpush.bf16.msra.mxu0 0
        %1620 = vmatpush.bf16.msra.mxu0 0
        %1621 = vmatpush.bf16.msra.mxu0 0
        %1622 = vmatpush.bf16.msra.mxu0 0
        %1623 = vmatpush.bf16.msra.mxu0 0
        %1624 = vmatpush.bf16.msra.mxu0 %v1234
        %1625 = vmatpush.bf16.msra.mxu0 %v1230
        %1626 = vmatmul.bf16.gmra.mxu0 %v1447
        %v1627 = vpop.f32.mrf.mxu0
        %v1628 = vadd.f32 %v1615, %v1627
        %v1629 = vpop.f32.mrf.mxu0
        %1630 = vdwg.mxu0
        %1631 = vmatpush.bf16.msra.mxu0 %v1067
        %1632 = vmatpush.bf16.msra.mxu0 %v1063
        %1633 = vmatpush.bf16.msra.mxu0 %v1059
        %1634 = vmatpush.bf16.msra.mxu0 %v1055
        %1635 = vmatpush.bf16.msra.mxu0 %v1051
        %1636 = vmatpush.bf16.msra.mxu0 %v1047
        %1637 = vmatpush.bf16.msra.mxu0 %v1043
        %1638 = vmatpush.bf16.msra.mxu0 %v1039
        %1639 = vmatmul.bf16.gmra.mxu0 %v424
        %v1640 = vpop.f32.mrf.mxu0
        %v1641 = vadd.f32 %v1440, %v1640
        %v1642 = vpop.f32.mrf.mxu0
        %1643 = vdwg.mxu0
        %1644 = vmatpush.bf16.msra.mxu0 %v1099
        %1645 = vmatpush.bf16.msra.mxu0 %v1095
        %1646 = vmatpush.bf16.msra.mxu0 %v1091
        %1647 = vmatpush.bf16.msra.mxu0 %v1087
        %1648 = vmatpush.bf16.msra.mxu0 %v1083
        %1649 = vmatpush.bf16.msra.mxu0 %v1079
        %1650 = vmatpush.bf16.msra.mxu0 %v1075
        %1651 = vmatpush.bf16.msra.mxu0 %v1071
        %1652 = vmatmul.bf16.gmra.mxu0 %v425
        %v1653 = vpop.f32.mrf.mxu0
        %v1654 = vadd.f32 %v1641, %v1653
        %v1655 = vpop.f32.mrf.mxu0
        %1656 = vdwg.mxu0
        %1657 = vmatpush.bf16.msra.mxu0 %v1131
        %1658 = vmatpush.bf16.msra.mxu0 %v1127
        %1659 = vmatpush.bf16.msra.mxu0 %v1123
        %1660 = vmatpush.bf16.msra.mxu0 %v1119
        %1661 = vmatpush.bf16.msra.mxu0 %v1115
        %1662 = vmatpush.bf16.msra.mxu0 %v1111
        %1663 = vmatpush.bf16.msra.mxu0 %v1107
        %1664 = vmatpush.bf16.msra.mxu0 %v1103
        %1665 = vmatmul.bf16.gmra.mxu0 %v426
        %v1666 = vpop.f32.mrf.mxu0
        %v1667 = vadd.f32 %v1654, %v1666
        %v1668 = vpop.f32.mrf.mxu0
        %1669 = vdwg.mxu0
        %1670 = vmatpush.bf16.msra.mxu0 %v1163
        %1671 = vmatpush.bf16.msra.mxu0 %v1159
        %1672 = vmatpush.bf16.msra.mxu0 %v1155
        %1673 = vmatpush.bf16.msra.mxu0 %v1151
        %1674 = vmatpush.bf16.msra.mxu0 %v1147
        %1675 = vmatpush.bf16.msra.mxu0 %v1143
        %1676 = vmatpush.bf16.msra.mxu0 %v1139
        %1677 = vmatpush.bf16.msra.mxu0 %v1135
        %1678 = vmatmul.bf16.gmra.mxu0 %v427
        %v1679 = vpop.f32.mrf.mxu0
        %v1680 = vadd.f32 %v1667, %v1679
        %v1681 = vpop.f32.mrf.mxu0
        %1682 = vdwg.mxu0
        %1683 = vmatpush.bf16.msra.mxu0 %v1195
        %1684 = vmatpush.bf16.msra.mxu0 %v1191
        %1685 = vmatpush.bf16.msra.mxu0 %v1187
        %1686 = vmatpush.bf16.msra.mxu0 %v1183
        %1687 = vmatpush.bf16.msra.mxu0 %v1179
        %1688 = vmatpush.bf16.msra.mxu0 %v1175
        %1689 = vmatpush.bf16.msra.mxu0 %v1171
        %1690 = vmatpush.bf16.msra.mxu0 %v1167
        %1691 = vmatmul.bf16.gmra.mxu0 %v428
        %v1692 = vpop.f32.mrf.mxu0
        %v1693 = vadd.f32 %v1680, %v1692
        %v1694 = vpop.f32.mrf.mxu0
        %1695 = vdwg.mxu0
        %1696 = vmatpush.bf16.msra.mxu0 %v1227
        %1697 = vmatpush.bf16.msra.mxu0 %v1223
        %1698 = vmatpush.bf16.msra.mxu0 %v1219
        %1699 = vmatpush.bf16.msra.mxu0 %v1215
        %1700 = vmatpush.bf16.msra.mxu0 %v1211
        %1701 = vmatpush.bf16.msra.mxu0 %v1207
        %1702 = vmatpush.bf16.msra.mxu0 %v1203
        %1703 = vmatpush.bf16.msra.mxu0 %v1199
        %1704 = vmatmul.bf16.gmra.mxu0 %v429
        %v1705 = vpop.f32.mrf.mxu0
        %v1706 = vadd.f32 %v1693, %v1705
        %v1707 = vpop.f32.mrf.mxu0
        %1708 = vdwg.mxu0
        %1709 = vmatpush.bf16.msra.mxu0 0
        %1710 = vmatpush.bf16.msra.mxu0 0
        %1711 = vmatpush.bf16.msra.mxu0 0
        %1712 = vmatpush.bf16.msra.mxu0 0
        %1713 = vmatpush.bf16.msra.mxu0 0
        %1714 = vmatpush.bf16.msra.mxu0 0
        %1715 = vmatpush.bf16.msra.mxu0 %v1235
        %1716 = vmatpush.bf16.msra.mxu0 %v1231
        %1717 = vmatmul.bf16.gmra.mxu0 %v1447
        %v1718 = vpop.f32.mrf.mxu0
        %v1719 = vadd.f32 %v1706, %v1718
        %v1720 = vpop.f32.mrf.mxu0
        %1721 = vdwg.mxu0
        %1722 = vmatpush.bf16.msra.mxu0 %v1068
        %1723 = vmatpush.bf16.msra.mxu0 %v1064
        %1724 = vmatpush.bf16.msra.mxu0 %v1060
        %1725 = vmatpush.bf16.msra.mxu0 %v1056
        %1726 = vmatpush.bf16.msra.mxu0 %v1052
        %1727 = vmatpush.bf16.msra.mxu0 %v1048
        %1728 = vmatpush.bf16.msra.mxu0 %v1044
        %1729 = vmatpush.bf16.msra.mxu0 %v1040
        %1730 = vmatmul.bf16.gmra.mxu0 %v424
        %v1731 = vpop.f32.mrf.mxu0
        %v1732 = vadd.f32 %v1441, %v1731
        %v1733 = vpop.f32.mrf.mxu0
        %1734 = vdwg.mxu0
        %1735 = vmatpush.bf16.msra.mxu0 %v1100
        %1736 = vmatpush.bf16.msra.mxu0 %v1096
        %1737 = vmatpush.bf16.msra.mxu0 %v1092
        %1738 = vmatpush.bf16.msra.mxu0 %v1088
        %1739 = vmatpush.bf16.msra.mxu0 %v1084
        %1740 = vmatpush.bf16.msra.mxu0 %v1080
        %1741 = vmatpush.bf16.msra.mxu0 %v1076
        %1742 = vmatpush.bf16.msra.mxu0 %v1072
        %1743 = vmatmul.bf16.gmra.mxu0 %v425
        %v1744 = vpop.f32.mrf.mxu0
        %v1745 = vadd.f32 %v1732, %v1744
        %v1746 = vpop.f32.mrf.mxu0
        %1747 = vdwg.mxu0
        %1748 = vmatpush.bf16.msra.mxu0 %v1132
        %1749 = vmatpush.bf16.msra.mxu0 %v1128
        %1750 = vmatpush.bf16.msra.mxu0 %v1124
        %1751 = vmatpush.bf16.msra.mxu0 %v1120
        %1752 = vmatpush.bf16.msra.mxu0 %v1116
        %1753 = vmatpush.bf16.msra.mxu0 %v1112
        %1754 = vmatpush.bf16.msra.mxu0 %v1108
        %1755 = vmatpush.bf16.msra.mxu0 %v1104
        %1756 = vmatmul.bf16.gmra.mxu0 %v426
        %v1757 = vpop.f32.mrf.mxu0
        %v1758 = vadd.f32 %v1745, %v1757
        %v1759 = vpop.f32.mrf.mxu0
        %1760 = vdwg.mxu0
        %1761 = vmatpush.bf16.msra.mxu0 %v1164
        %1762 = vmatpush.bf16.msra.mxu0 %v1160
        %1763 = vmatpush.bf16.msra.mxu0 %v1156
        %1764 = vmatpush.bf16.msra.mxu0 %v1152
        %1765 = vmatpush.bf16.msra.mxu0 %v1148
        %1766 = vmatpush.bf16.msra.mxu0 %v1144
        %1767 = vmatpush.bf16.msra.mxu0 %v1140
        %1768 = vmatpush.bf16.msra.mxu0 %v1136
        %1769 = vmatmul.bf16.gmra.mxu0 %v427
        %v1770 = vpop.f32.mrf.mxu0
        %v1771 = vadd.f32 %v1758, %v1770
        %v1772 = vpop.f32.mrf.mxu0
        %1773 = vdwg.mxu0
        %1774 = vmatpush.bf16.msra.mxu0 %v1196
        %1775 = vmatpush.bf16.msra.mxu0 %v1192
        %1776 = vmatpush.bf16.msra.mxu0 %v1188
        %1777 = vmatpush.bf16.msra.mxu0 %v1184
        %1778 = vmatpush.bf16.msra.mxu0 %v1180
        %1779 = vmatpush.bf16.msra.mxu0 %v1176
        %1780 = vmatpush.bf16.msra.mxu0 %v1172
        %1781 = vmatpush.bf16.msra.mxu0 %v1168
        %1782 = vmatmul.bf16.gmra.mxu0 %v428
        %v1783 = vpop.f32.mrf.mxu0
        %v1784 = vadd.f32 %v1771, %v1783
        %v1785 = vpop.f32.mrf.mxu0
        %1786 = vdwg.mxu0
        %1787 = vmatpush.bf16.msra.mxu0 %v1228
        %1788 = vmatpush.bf16.msra.mxu0 %v1224
        %1789 = vmatpush.bf16.msra.mxu0 %v1220
        %1790 = vmatpush.bf16.msra.mxu0 %v1216
        %1791 = vmatpush.bf16.msra.mxu0 %v1212
        %1792 = vmatpush.bf16.msra.mxu0 %v1208
        %1793 = vmatpush.bf16.msra.mxu0 %v1204
        %1794 = vmatpush.bf16.msra.mxu0 %v1200
        %1795 = vmatmul.bf16.gmra.mxu0 %v429
        %v1796 = vpop.f32.mrf.mxu0
        %v1797 = vadd.f32 %v1784, %v1796
        %v1798 = vpop.f32.mrf.mxu0
        %1799 = vdwg.mxu0
        %1800 = vmatpush.bf16.msra.mxu0 0
        %1801 = vmatpush.bf16.msra.mxu0 0
        %1802 = vmatpush.bf16.msra.mxu0 0
        %1803 = vmatpush.bf16.msra.mxu0 0
        %1804 = vmatpush.bf16.msra.mxu0 0
        %1805 = vmatpush.bf16.msra.mxu0 0
        %1806 = vmatpush.bf16.msra.mxu0 %v1236
        %1807 = vmatpush.bf16.msra.mxu0 %v1232
        %1808 = vmatmul.bf16.gmra.mxu0 %v1447
        %v1809 = vpop.f32.mrf.mxu0
        %v1810 = vadd.f32 %v1797, %v1809
        %v1811 = vpop.f32.mrf.mxu0
        %1812 = vdwg.mxu0
        %v1813 = vmax.f32 %v1537, 0.0
        %v1814 = vmax.f32 %v1628, 0.0
        %v1815 = vmax.f32 %v1719, 0.0
        %v1816 = vmax.f32 %v1810, 0.0
        %v1817 = vpack.c.bf16 %v1813, %v1813
        %v1818 = vpack.c.bf16 %v1814, %v1814
        %v1819 = vpack.c.bf16 %v1815, %v1815
        %v1820 = vpack.c.bf16 %v1816, %v1816
        %v1821 = vld [vmem:[%s3] sm:$0xf]
        %v1822 = vld [vmem:[%s3 + $0x4] sm:$0xf]
        %v1823 = vld [vmem:[%s3 + $0x8] sm:$0xf]
        %v1824 = vld [vmem:[%s3 + $0xc] sm:$0xf]
        %v1825 = vld [vmem:[%s3 + $0x10] sm:$0xf]
        %v1826 = vld [vmem:[%s3 + $0x14] sm:$0xf]
        %v1827 = vld [vmem:[%s3 + $0x18] sm:$0xf]
        %v1828 = vld [vmem:[%s3 + $0x1c] sm:$0xf]
        %v1829 = vld [vmem:[%s3 + $0x20] sm:$0xf]
        %v1830 = vld [vmem:[%s3 + $0x24] sm:$0xf]
        %v1831 = vld [vmem:[%s3 + $0x28] sm:$0xf]
        %v1832 = vld [vmem:[%s3 + $0x2c] sm:$0xf]
        %v1833 = vld [vmem:[%s3 + $0x30] sm:$0xf]
        %v1834 = vld [vmem:[%s3 + $0x34] sm:$0xf]
        %v1835 = vld [vmem:[%s3 + $0x38] sm:$0xf]
        %v1836 = vld [vmem:[%s3 + $0x3c] sm:$0xf]
        %v1837 = vld [vmem:[%s3 + $0x40] sm:$0xf]
        %v1838 = vld [vmem:[%s3 + $0x44] sm:$0xf]
        %v1839 = vld [vmem:[%s3 + $0x48] sm:$0xf]
        %v1840 = vld [vmem:[%s3 + $0x4c] sm:$0xf]
        %v1841 = vld [vmem:[%s3 + $0x50] sm:$0xf]
        %v1842 = vld [vmem:[%s3 + $0x54] sm:$0xf]
        %v1843 = vld [vmem:[%s3 + $0x58] sm:$0xf]
        %v1844 = vld [vmem:[%s3 + $0x5c] sm:$0xf]
        %v1845 = vld [vmem:[%s3 + $0x60] sm:$0xf]
        %v1846 = vld [vmem:[%s3 + $0x64] sm:$0xf]
        %v1847 = vld [vmem:[%s3 + $0x68] sm:$0xf]
        %v1848 = vld [vmem:[%s3 + $0x6c] sm:$0xf]
        %v1849 = vld [vmem:[%s3 + $0x70] sm:$0xf]
        %v1850 = vld [vmem:[%s3 + $0x74] sm:$0xf]
        %v1851 = vld [vmem:[%s3 + $0x78] sm:$0xf]
        %v1852 = vld [vmem:[%s3 + $0x7c] sm:$0xf]
        %v1853 = vld [vmem:[%s3 + $0x80] sm:$0xf]
        %v1854 = vld [vmem:[%s3 + $0x84] sm:$0xf]
        %v1855 = vld [vmem:[%s3 + $0x88] sm:$0xf]
        %v1856 = vld [vmem:[%s3 + $0x8c] sm:$0xf]
        %v1857 = vld [vmem:[%s3 + $0x90] sm:$0xf]
        %v1858 = vld [vmem:[%s3 + $0x94] sm:$0xf]
        %v1859 = vld [vmem:[%s3 + $0x98] sm:$0xf]
        %v1860 = vld [vmem:[%s3 + $0x9c] sm:$0xf]
        %v1861 = vld [vmem:[%s3 + $0xa0] sm:$0xf]
        %v1862 = vld [vmem:[%s3 + $0xa4] sm:$0xf]
        %v1863 = vld [vmem:[%s3 + $0xa8] sm:$0xf]
        %v1864 = vld [vmem:[%s3 + $0xac] sm:$0xf]
        %v1865 = vld [vmem:[%s3 + $0xb0] sm:$0xf]
        %v1866 = vld [vmem:[%s3 + $0xb4] sm:$0xf]
        %v1867 = vld [vmem:[%s3 + $0xb8] sm:$0xf]
        %v1868 = vld [vmem:[%s3 + $0xbc] sm:$0xf]
        %v1869 = vld [vmem:[%s3 + $0xc0] sm:$0xf]
        %v1870 = vld [vmem:[%s3 + $0xc4] sm:$0xf]
        %v1871 = vld [vmem:[%s4] sm:$0x1]
        %v1922 = vunpack.c.l.b16 %v1821
        %v1923 = vunpack.c.l.b16 %v1822
        %v1924 = vunpack.c.l.b16 %v1823
        %v1925 = vunpack.c.l.b16 %v1824
        %v1926 = vunpack.c.l.b16 %v1825
        %v1927 = vunpack.c.l.b16 %v1826
        %v1928 = vunpack.c.l.b16 %v1827
        %v1929 = vunpack.c.l.b16 %v1828
        %v1930 = vunpack.c.l.b16 %v1829
        %v1931 = vunpack.c.l.b16 %v1830
        %v1932 = vunpack.c.l.b16 %v1831
        %v1933 = vunpack.c.l.b16 %v1832
        %v1934 = vunpack.c.l.b16 %v1833
        %v1935 = vunpack.c.l.b16 %v1834
        %v1936 = vunpack.c.l.b16 %v1835
        %v1937 = vunpack.c.l.b16 %v1836
        %v1938 = vunpack.c.l.b16 %v1837
        %v1939 = vunpack.c.l.b16 %v1838
        %v1940 = vunpack.c.l.b16 %v1839
        %v1941 = vunpack.c.l.b16 %v1840
        %v1942 = vunpack.c.l.b16 %v1841
        %v1943 = vunpack.c.l.b16 %v1842
        %v1944 = vunpack.c.l.b16 %v1843
        %v1945 = vunpack.c.l.b16 %v1844
        %v1946 = vunpack.c.l.b16 %v1845
        %v1947 = vunpack.c.l.b16 %v1846
        %v1948 = vunpack.c.l.b16 %v1847
        %v1949 = vunpack.c.l.b16 %v1848
        %v1950 = vunpack.c.l.b16 %v1849
        %v1951 = vunpack.c.l.b16 %v1850
        %v1952 = vunpack.c.l.b16 %v1851
        %v1953 = vunpack.c.l.b16 %v1852
        %v1954 = vunpack.c.l.b16 %v1853
        %v1955 = vunpack.c.l.b16 %v1854
        %v1956 = vunpack.c.l.b16 %v1855
        %v1957 = vunpack.c.l.b16 %v1856
        %v1958 = vunpack.c.l.b16 %v1857
        %v1959 = vunpack.c.l.b16 %v1858
        %v1960 = vunpack.c.l.b16 %v1859
        %v1961 = vunpack.c.l.b16 %v1860
        %v1962 = vunpack.c.l.b16 %v1861
        %v1963 = vunpack.c.l.b16 %v1862
        %v1964 = vunpack.c.l.b16 %v1863
        %v1965 = vunpack.c.l.b16 %v1864
        %v1966 = vunpack.c.l.b16 %v1865
        %v1967 = vunpack.c.l.b16 %v1866
        %v1968 = vunpack.c.l.b16 %v1867
        %v1969 = vunpack.c.l.b16 %v1868
        %v1970 = vunpack.c.l.b16 %v1869
        %v1971 = vunpack.c.l.b16 %v1870
        %v1972 = vpack.c.b16 %v1923, %v1922
        %v1973 = vpack.c.b16 %v1925, %v1924
        %v1974 = vpack.c.b16 %v1927, %v1926
        %v1975 = vpack.c.b16 %v1929, %v1928
        %v1976 = vpack.c.b16 %v1931, %v1930
        %v1977 = vpack.c.b16 %v1933, %v1932
        %v1978 = vpack.c.b16 %v1935, %v1934
        %v1979 = vpack.c.b16 %v1937, %v1936
        %v1980 = vpack.c.b16 %v1939, %v1938
        %v1981 = vpack.c.b16 %v1941, %v1940
        %v1982 = vpack.c.b16 %v1943, %v1942
        %v1983 = vpack.c.b16 %v1945, %v1944
        %v1984 = vpack.c.b16 %v1947, %v1946
        %v1985 = vpack.c.b16 %v1949, %v1948
        %v1986 = vpack.c.b16 %v1951, %v1950
        %v1987 = vpack.c.b16 %v1953, %v1952
        %v1988 = vpack.c.b16 %v1955, %v1954
        %v1989 = vpack.c.b16 %v1957, %v1956
        %v1990 = vpack.c.b16 %v1959, %v1958
        %v1991 = vpack.c.b16 %v1961, %v1960
        %v1992 = vpack.c.b16 %v1963, %v1962
        %v1993 = vpack.c.b16 %v1965, %v1964
        %v1994 = vpack.c.b16 %v1967, %v1966
        %v1995 = vpack.c.b16 %v1969, %v1968
        %v1996 = vpack.c.b16 %v1971, %v1970
        %vm2022 = vcmask 130048
        %v2024 = vsel %vm2022, %v1820, 0
        %2026 = vmatpush.bf16.msra.mxu0 %v1979
        %2027 = vmatpush.bf16.msra.mxu0 %v1978
        %2028 = vmatpush.bf16.msra.mxu0 %v1977
        %2029 = vmatpush.bf16.msra.mxu0 %v1976
        %2030 = vmatpush.bf16.msra.mxu0 %v1975
        %2031 = vmatpush.bf16.msra.mxu0 %v1974
        %2032 = vmatpush.bf16.msra.mxu0 %v1973
        %2033 = vmatpush.bf16.msra.mxu0 %v1972
        %2034 = vmatmul.bf16.gmra.mxu0 %v1817
        %v2035 = vpop.f32.mrf.mxu0
        %v2036 = vadd.f32 %v1871, %v2035
        %v2037 = vpop.f32.mrf.mxu0
        %2038 = vdwg.mxu0
        %2039 = vmatpush.bf16.msra.mxu0 %v1987
        %2040 = vmatpush.bf16.msra.mxu0 %v1986
        %2041 = vmatpush.bf16.msra.mxu0 %v1985
        %2042 = vmatpush.bf16.msra.mxu0 %v1984
        %2043 = vmatpush.bf16.msra.mxu0 %v1983
        %2044 = vmatpush.bf16.msra.mxu0 %v1982
        %2045 = vmatpush.bf16.msra.mxu0 %v1981
        %2046 = vmatpush.bf16.msra.mxu0 %v1980
        %2047 = vmatmul.bf16.gmra.mxu0 %v1818
        %v2048 = vpop.f32.mrf.mxu0
        %v2049 = vadd.f32 %v2036, %v2048
        %v2050 = vpop.f32.mrf.mxu0
        %2051 = vdwg.mxu0
        %2052 = vmatpush.bf16.msra.mxu0 %v1995
        %2053 = vmatpush.bf16.msra.mxu0 %v1994
        %2054 = vmatpush.bf16.msra.mxu0 %v1993
        %2055 = vmatpush.bf16.msra.mxu0 %v1992
        %2056 = vmatpush.bf16.msra.mxu0 %v1991
        %2057 = vmatpush.bf16.msra.mxu0 %v1990
        %2058 = vmatpush.bf16.msra.mxu0 %v1989
        %2059 = vmatpush.bf16.msra.mxu0 %v1988
        %2060 = vmatmul.bf16.gmra.mxu0 %v1819
        %v2061 = vpop.f32.mrf.mxu0
        %v2062 = vadd.f32 %v2049, %v2061
        %v2063 = vpop.f32.mrf.mxu0
        %2064 = vdwg.mxu0
        %2065 = vmatpush.bf16.msra.mxu0 0
        %2066 = vmatpush.bf16.msra.mxu0 0
        %2067 = vmatpush.bf16.msra.mxu0 0
        %2068 = vmatpush.bf16.msra.mxu0 0
        %2069 = vmatpush.bf16.msra.mxu0 0
        %2070 = vmatpush.bf16.msra.mxu0 0
        %2071 = vmatpush.bf16.msra.mxu0 0
        %2072 = vmatpush.bf16.msra.mxu0 %v1996
        %2073 = vmatmul.bf16.gmra.mxu0 %v2024
        %v2074 = vpop.f32.mrf.mxu0
        %v2075 = vadd.f32 %v2062, %v2074
        %v2076 = vpop.f32.mrf.mxu0
        %2077 = vdwg.mxu0
        %v2078 = vmax.f32 %v2075, 0.0
        %vm2079 = vcmask 73728
        %v2080 = vsel %vm2079, %v2078, -inf
        %2081 = vmax.xlane.f32.xlu0 %v2080
        %v2082 = vpop.xlane.xlu0 %2081
        %v2083 = vsub.f32 %v2078, %v2082
        %v2084 = vmul.f32 %v2083, 1.442695
        %v2085 = vpow.pop %v2084
        %v2086 = vsel %vm2079, %v2085, 0.0
        %2087 = vadd.xlane.f32.xlu0 %v2086
        %v2088 = vpop.xlane.xlu0 %2087
        %v2089 = vlog2.pop %v2088
        %v2090 = vmul.f32 %v2089, 0.6931472
        %v2091 = vadd.f32 %v2082, %v2090
        %v2092 = vsub.f32 %v2078, %v2091
        %2093 = vst.msk [vmem:[%s214] sm:$0x1] %vm2079, %v2092
        %s2094 = sand.u32 %s137, 1
        %s2095 = scalar_lea.sflag [#allocation3], %s2094
        %s2096 = sand.u32 %s137, 1
        %s2097 = scalar_lea.vmem [#allocation2], %s2096
        // Predicated region
        $region41: #{classifier_forward.5} parent=39 // pred_check
          %p2098 = pneg %p147
        $region42: #{classifier_forward.5} parent=39 // pred_check_branch
          %2100 = sbr.rel (%p2098) target = $region44
        $region43: #{classifier_forward.5} parent=39 // pred_region
          %2102 = vsyncadd %s2095, 0
          %s2103 = scalar_lea.hbm %s5, %s19
          %s2105 = sshll.u32 %s2097, 4
          %s2106 = int_to_ptr.vmem [resolvable:$true] %s2105
          %s2107 = sshll.u32 %s2103, 4
          %s2108 = int_to_ptr.hbm [resolvable:$true] %s2107
          %2110 = dma.vmem_to_hbm [thread:$0]  %s2106, 16, %s2108, %s2095
        $region44: #{classifier_forward.5} parent=39 // pred_fallthru
          _
      $region40: #{classifier_forward.5} parent=5 // pred_fallthru
        _
      %p2111 = scmp.le.s32.totalorder 2, %s14
      // Predicated region
      $region45: #{classifier_forward.5} parent=5 // pred_check
        %p2112 = pneg %p2111
      $region46: #{classifier_forward.5} parent=5 // pred_check_branch
        %2114 = sbr.rel (%p2112) target = $region48
      $region47: #{classifier_forward.5} parent=5 // pred_region
        %s2115 = ssub.s32 %s14, 2
        // Predicated region
        $region49: #{classifier_forward.5} parent=47 // pred_check
          %p2116 = pneg %p153
        $region50: #{classifier_forward.5} parent=47 // pred_check_branch
          %2118 = sbr.rel (%p2116) target = $region52
        $region51: #{classifier_forward.5} parent=47 // pred_region
          %s2119 = sand.u32 %s138, 1
          %s2120 = scalar_lea.sflag [#allocation3], %s2119
          %s2121 = sand.u32 %s138, 1
          %s2122 = scalar_lea.vmem [#allocation2], %s2121
          %2124 = dma.done %s2120, 16
        $region52: #{classifier_forward.5} parent=47 // pred_fallthru
          _
      $region48: #{classifier_forward.5} parent=5 // pred_fallthru
        _
    $region6: #{classifier_forward.5} parent=1 // loop_footer
      %s18 = sadd.s32 1, %s14
    $region7: #{classifier_forward.5} parent=1 // loop_footer_branch
      %13 = sbr.rel target = $region3
    $region8: #{classifier_forward.5} parent=1 // loop_exit
      _
    %2125 = vsyncpa [#allocation3], 1
    %s2126 = scalar_lea.sflag [#allocation3], 1
    %2127 = vsyncpa %s2126, 1

</llo_original>
